<compile_context>
chip_gen: v7x
topology: tpu7x:2x2x1
jax: 0.10.0
libtpu: 0.0.40
codegen_flags: <defaults>
</compile_context>

<pallas_src>
import functools

import jax
import jax.numpy as jnp
from jax.experimental import pallas as pl
from jax.experimental.pallas import tpu as pltpu


# ----------------------------- Pallas kernel ------------------------------- #

def _conv_bn_kernel(xc_ref, w_ref, g_ref, beta_ref, o_ref,
                    sum_ref, sq_ref, c_ref, scale_ref, shift_ref,
                    *, m_valid, eps):
    """Fused conv(matmul) + training-mode BatchNorm, 2-phase grid.

    grid = (2, n_m_tiles):
      phase 0: accumulate shifted per-channel sum / sum^2; finalize scale/shift.
      phase 1: recompute the matmul tile and write the normalized output.
    """
    phase = pl.program_id(0)
    i = pl.program_id(1)
    n_tiles = pl.num_programs(1)
    tile_m = xc_ref.shape[0]

    # Conv tile on the MXU (bf16 x bf16 -> f32 accumulate).
    y = jnp.dot(xc_ref[...], w_ref[...], preferred_element_type=jnp.float32)

    @pl.when((phase == 0) & (i == 0))
    def _init():
        # Shifted sum-of-squares: use the first tile's per-channel mean as a
        # shift c, so var = E[(y-c)^2] - (E[y-c])^2 does not suffer
        # catastrophic cancellation when |mean| >> std.
        c_ref[...] = jnp.mean(y, axis=0, keepdims=True)
        sum_ref[...] = jnp.zeros_like(sum_ref)
        sq_ref[...] = jnp.zeros_like(sq_ref)

    @pl.when(phase == 0)
    def _accumulate():
        # Mask rows past the real M (M was zero-padded to a multiple of tile_m).
        row = jax.lax.broadcasted_iota(jnp.int32, (tile_m, 1), 0) + i * tile_m
        yc = jnp.where(row < m_valid, y - c_ref[...], 0.0)
        sum_ref[...] += jnp.sum(yc, axis=0, keepdims=True)
        sq_ref[...] += jnp.sum(yc * yc, axis=0, keepdims=True)

    @pl.when((phase == 0) & (i == n_tiles - 1))
    def _finalize_stats():
        inv_m = 1.0 / m_valid
        mu_c = sum_ref[...] * inv_m                       # E[y] - c
        var = jnp.maximum(sq_ref[...] * inv_m - mu_c * mu_c, 0.0)
        mean = mu_c + c_ref[...]
        scale = g_ref[...] * jax.lax.rsqrt(var + eps)     # gamma / sqrt(var+eps)
        scale_ref[...] = scale
        shift_ref[...] = beta_ref[...] - mean * scale

    @pl.when(phase == 1)
    def _write_out():
        # Single FMA per element; scale/shift hoisted (computed once in phase 0).
        o_ref[...] = y * scale_ref[...] + shift_ref[...]


# ------------------------------ JAX wrapper -------------------------------- #

def _round_up(x, n):
    return (x + n - 1) // n * n


def _im2col(x, kh, kw, stride, pad, dilation):
    """x: (N, Cin, H, W) -> (N*OH*OW, Cin*kh*kw), plus (OH, OW)."""
    n, c, h, w = x.shape
    xp = jnp.pad(x, ((0, 0), (0, 0), (pad, pad), (pad, pad)))
    oh = (h + 2 * pad - dilation * (kh - 1) - 1) // stride + 1
    ow = (w + 2 * pad - dilation * (kw - 1) - 1) // stride + 1
    patches = []
    for i in range(kh):
        for j in range(kw):
            hi = i * dilation
            wj = j * dilation
            patches.append(
                xp[:, :, hi:hi + stride * oh:stride, wj:wj + stride * ow:stride])
    # (kh*kw, N, C, OH, OW) -> (N, OH, OW, C, kh*kw) -> (M, C*kh*kw)
    p = jnp.stack(patches, axis=0).transpose(1, 3, 4, 2, 0)
    return p.reshape(n * oh * ow, c * kh * kw), oh, ow


def conv_bn(x, conv_w, conv_b, gamma, beta, *, stride, pad, dilation=1,
            eps=1e-5, tile_m=1024):
    """ConvBN forward.  x: (N, Cin, H, W) NCHW.  Returns (N, Cout, OH, OW).

    NCHW in/out matches the PyTorch module; the NCHW<->channel-last shuffles
    happen in XLA (skip them if the surrounding model can consume NHWC).
    """
    n, cin, _, _ = x.shape
    cout, _, kh, kw = conv_w.shape

    # A per-channel conv bias is cancelled exactly by training-mode BN
    # (mean subtraction), so it never enters the kernel.
    del conv_b

    # im2col in bf16 (matmul input precision); accumulation stays f32 in-kernel.
    x_col, oh, ow = _im2col(x.astype(jnp.bfloat16), kh, kw, stride, pad, dilation)
    m, k = x_col.shape

    # Lane dims are left at their natural sizes (legal: block dim == full array
    # dim) to avoid HBM traffic amplification for small channel counts.  Only
    # when Cout >= 128 do we round it up to a 128-multiple, keeping stores
    # fully lane-dense at small relative cost.
    cout_pad = _round_up(cout, 128) if cout >= 128 else cout
    tile_m = _round_up(min(tile_m, _round_up(m, 8)), 8)
    m_pad = _round_up(m, tile_m)
    n_tiles = m_pad // tile_m

    x_col_p = jnp.pad(x_col, ((0, m_pad - m), (0, 0)))                   # bf16
    w_flat = conv_w.reshape(cout, cin * kh * kw).T.astype(jnp.bfloat16)  # (K, Cout)
    w_p = jnp.pad(w_flat, ((0, 0), (0, cout_pad - cout)))
    g_row = jnp.pad(gamma.astype(jnp.float32).reshape(1, cout),
                    ((0, 0), (0, cout_pad - cout)))
    b_row = jnp.pad(beta.astype(jnp.float32).reshape(1, cout),
                    ((0, 0), (0, cout_pad - cout)))

    # Explicit VMEM budget (double-buffered x_col + out tiles, resident weights,
    # tiny scalar rows / scratch), with headroom.  Small enough for v7x's VMEM.
    k_lanes = _round_up(k, 128)                 # physical lane padding in VMEM
    c_lanes = _round_up(cout_pad, 128)
    vmem_bytes = (2 * tile_m * k_lanes * 2      # x_col tiles (bf16, 2 buffers)
                  + 2 * tile_m * c_lanes * 4    # output tiles (f32, 2 buffers)
                  + 2 * _round_up(k, 8) * c_lanes * 2   # weights (bf16)
                  + 16 * c_lanes * 4)           # gamma/beta rows + scratch
    vmem_limit = int(min(max(4 * vmem_bytes, 16 * 1024 * 1024),
                         48 * 1024 * 1024))

    kern = functools.partial(_conv_bn_kernel, m_valid=int(m), eps=float(eps))

    y_bn = pl.pallas_call(
        kern,
        out_shape=jax.ShapeDtypeStruct((m_pad, cout_pad), jnp.float32),
        grid_spec=pltpu.PrefetchScalarGridSpec(
            num_scalar_prefetch=0,
            grid=(2, n_tiles),                    # (phase, m_tile); phase outer
            in_specs=[
                pl.BlockSpec((tile_m, k), lambda p, i: (i, 0)),
                pl.BlockSpec((k, cout_pad), lambda p, i: (0, 0)),       # resident
                pl.BlockSpec((1, cout_pad), lambda p, i: (0, 0)),       # gamma
                pl.BlockSpec((1, cout_pad), lambda p, i: (0, 0)),       # beta
            ],
            # Output block index is pinned to 0 during phase 0 (p*i == 0), so no
            # garbage write-backs happen before phase 1 fills each tile.
            out_specs=pl.BlockSpec((tile_m, cout_pad), lambda p, i: (p * i, 0)),
            scratch_shapes=[
                pltpu.VMEM((1, cout_pad), jnp.float32),   # shifted sum
                pltpu.VMEM((1, cout_pad), jnp.float32),   # shifted sum of squares
                pltpu.VMEM((1, cout_pad), jnp.float32),   # shift c (first-tile mean)
                pltpu.VMEM((1, cout_pad), jnp.float32),   # BN scale
                pltpu.VMEM((1, cout_pad), jnp.float32),   # BN shift
            ]),
        compiler_params=pltpu.CompilerParams(
            dimension_semantics=("arbitrary", "arbitrary"),
            vmem_limit_bytes=vmem_limit),
    )(x_col_p, w_p, g_row, b_row)

    # (M_pad, Cout_pad) -> (M, Cout) -> (N, OH, OW, Cout) -> NCHW
    y_bn = y_bn[:m, :cout]
    return y_bn.reshape(n, oh, ow, cout).transpose(0, 3, 1, 2)


# ------------------------------- Reference --------------------------------- #

def conv_bn_ref(x, conv_w, conv_b, gamma, beta, *, stride, pad, dilation=1,
                eps=1e-5):
    """f32 reference matching the kernel's compute precision (conv inputs are
    rounded to bf16 like the MXU path; accumulation and BN math stay f32)."""
    xb = x.astype(jnp.bfloat16).astype(jnp.float32)
    wb = conv_w.astype(jnp.bfloat16).astype(jnp.float32)
    y = jax.lax.conv_general_dilated(
        xb, wb,
        window_strides=(stride, stride),
        padding=((pad, pad), (pad, pad)),
        rhs_dilation=(dilation, dilation),
        dimension_numbers=("NCHW", "OIHW", "NCHW"),
        preferred_element_type=jnp.float32)
    y = y + conv_b.reshape(1, -1, 1, 1)
    mean = jnp.mean(y, axis=(0, 2, 3), keepdims=True)
    var = jnp.mean((y - mean) ** 2, axis=(0, 2, 3), keepdims=True)  # biased
    return (y - mean) * (gamma.reshape(1, -1, 1, 1) *
                         jax.lax.rsqrt(var + eps)) + beta.reshape(1, -1, 1, 1)


# --------------------------------- Main ------------------------------------ #

if __name__ == "__main__":
    # ConvBN(in_channel=4, out_channel=8, kernel=3, stride=1, pad=1, dilation=1)
    N, CIN, H, W = 2, 4, 16, 16
    COUT, KSZ, STRIDE, PAD, DIL = 8, 3, 1, 1, 1

    key = jax.random.PRNGKey(0)
    kx, kw, kb, kg, kbe = jax.random.split(key, 5)

    x = jax.random.normal(kx, (N, CIN, H, W), dtype=jnp.float32)
    conv_w = jax.random.normal(kw, (COUT, CIN, KSZ, KSZ), dtype=jnp.float32) * 0.1
    conv_b = jax.random.normal(kb, (COUT,), dtype=jnp.float32) * 0.1
    gamma = 1.0 + 0.1 * jax.random.normal(kg, (COUT,), dtype=jnp.float32)
    beta = 0.1 * jax.random.normal(kbe, (COUT,), dtype=jnp.float32)

    out = conv_bn(x, conv_w, conv_b, gamma, beta,
                  stride=STRIDE, pad=PAD, dilation=DIL)
    out = jax.block_until_ready(out)

    ref = conv_bn_ref(x, conv_w, conv_b, gamma, beta,
                      stride=STRIDE, pad=PAD, dilation=DIL)
    assert out.shape == (N, COUT, H, W), out.shape
    err = float(jnp.max(jnp.abs(out - ref)))
    assert err < 1e-3, err

    print("KERNEL_OK")
</pallas_src>

<mosaic_0001>
module attributes {stable_mosaic.version = 11 : i64} {
  func.func @_conv_bn_kernel(%arg0: i32, %arg1: i32, %arg2: memref<512x36xbf16, #tpu.memory_space<vmem>>, %arg3: memref<36x8xbf16, #tpu.memory_space<vmem>>, %arg4: memref<1x8xf32, #tpu.memory_space<vmem>>, %arg5: memref<1x8xf32, #tpu.memory_space<vmem>>, %arg6: memref<512x8xf32, #tpu.memory_space<vmem>>, %arg7: memref<1x8xf32, #tpu.memory_space<vmem>>, %arg8: memref<1x8xf32, #tpu.memory_space<vmem>>, %arg9: memref<1x8xf32, #tpu.memory_space<vmem>>, %arg10: memref<1x8xf32, #tpu.memory_space<vmem>>, %arg11: memref<1x8xf32, #tpu.memory_space<vmem>>) attributes {dimension_semantics = [#tpu.dimension_semantics<arbitrary>, #tpu.dimension_semantics<arbitrary>], iteration_bounds = array<i64: 2, 1>, scalar_prefetch = 0 : i64, scratch_operands = 5 : i64, tpu.core_type = #tpu.core_type<tc>, window_params = [{transform_indices = @transform_0, window_bounds = array<i64: 512, 36>}, {pipeline_mode = #tpu.pipeline_mode<synchronous>, transform_indices = @transform_1, window_bounds = array<i64: 36, 8>}, {pipeline_mode = #tpu.pipeline_mode<synchronous>, transform_indices = @transform_2, window_bounds = array<i64: 1, 8>}, {pipeline_mode = #tpu.pipeline_mode<synchronous>, transform_indices = @transform_3, window_bounds = array<i64: 1, 8>}, {transform_indices = @transform_4, window_bounds = array<i64: 512, 8>}]} {
    %c0 = arith.constant 0 : index
    %c0_0 = arith.constant 0 : index
    %0 = vector.load %arg2[%c0, %c0_0] : memref<512x36xbf16, #tpu.memory_space<vmem>>, vector<512x36xbf16>
    %c0_1 = arith.constant 0 : index
    %c0_2 = arith.constant 0 : index
    %1 = vector.load %arg3[%c0_1, %c0_2] : memref<36x8xbf16, #tpu.memory_space<vmem>>, vector<36x8xbf16>
    %cst = arith.constant dense<0.000000e+00> : vector<512x8xf32>
    %2 = tpu.matmul %0, %1, %cst {dimension_numbers = #tpu.dot_dimension_numbers<[1], [0], [0], [1], [0, 0, 1, 1], [], []>} : vector<512x36xbf16>, vector<36x8xbf16>, vector<512x8xf32> -> vector<512x8xf32>
    %c0_i32 = arith.constant 0 : i32
    %3 = arith.cmpi eq, %arg0, %c0_i32 : i32
    %c0_i32_3 = arith.constant 0 : i32
    %4 = arith.cmpi eq, %arg1, %c0_i32_3 : i32
    %5 = arith.andi %3, %4 : i1
    %6 = arith.extui %5 : i1 to i32
    %c0_i32_4 = arith.constant 0 : i32
    %7 = arith.cmpi ne, %6, %c0_i32_4 : i32
    scf.if %7 {
      %cst_11 = arith.constant dense<0.000000e+00> : vector<8xf32>
      %19 = vector.multi_reduction <add>, %2, %cst_11 [0] : vector<512x8xf32> to vector<8xf32>
      %20 = vector.shape_cast %19 : vector<8xf32> to vector<1x8xf32>
      %cst_12 = arith.constant 5.120000e+02 : f32
      %21 = vector.broadcast %cst_12 : f32 to vector<1x8xf32>
      %22 = arith.divf %20, %21 : vector<1x8xf32>
      %c0_13 = arith.constant 0 : index
      %c0_14 = arith.constant 0 : index
      %23 = vector.load %arg9[%c0_13, %c0_14] : memref<1x8xf32, #tpu.memory_space<vmem>>, vector<1x8xf32>
      tpu.vector_store %arg9[%c0_13, %c0_14], %22 {strides = array<i32>} : memref<1x8xf32, #tpu.memory_space<vmem>>, vector<1x8xf32>,
      %cst_15 = arith.constant 0.000000e+00 : f32
      %24 = vector.broadcast %cst_15 : f32 to vector<1x8xf32>
      %c0_16 = arith.constant 0 : index
      %c0_17 = arith.constant 0 : index
      %25 = vector.load %arg7[%c0_16, %c0_17] : memref<1x8xf32, #tpu.memory_space<vmem>>, vector<1x8xf32>
      tpu.vector_store %arg7[%c0_16, %c0_17], %24 {strides = array<i32>} : memref<1x8xf32, #tpu.memory_space<vmem>>, vector<1x8xf32>,
      %cst_18 = arith.constant 0.000000e+00 : f32
      %26 = vector.broadcast %cst_18 : f32 to vector<1x8xf32>
      %c0_19 = arith.constant 0 : index
      %c0_20 = arith.constant 0 : index
      %27 = vector.load %arg8[%c0_19, %c0_20] : memref<1x8xf32, #tpu.memory_space<vmem>>, vector<1x8xf32>
      tpu.vector_store %arg8[%c0_19, %c0_20], %26 {strides = array<i32>} : memref<1x8xf32, #tpu.memory_space<vmem>>, vector<1x8xf32>,
    } else {
    }
    %c0_i32_5 = arith.constant 0 : i32
    %8 = arith.cmpi eq, %arg0, %c0_i32_5 : i32
    %9 = arith.extui %8 : i1 to i32
    %c0_i32_6 = arith.constant 0 : i32
    %10 = arith.cmpi ne, %9, %c0_i32_6 : i32
    scf.if %10 {
      %19 = tpu.iota {dimensions = array<i32: 0>} : vector<512x1xi32>
      %c512_i32 = arith.constant 512 : i32
      %20 = arith.muli %arg1, %c512_i32 : i32
      %21 = vector.broadcast %20 : i32 to vector<512x1xi32>
      %22 = arith.addi %19, %21 : vector<512x1xi32>
      %c512_i32_11 = arith.constant 512 : i32
      %23 = vector.broadcast %c512_i32_11 : i32 to vector<512x1xi32>
      %24 = arith.cmpi slt, %22, %23 : vector<512x1xi32>
      %c0_12 = arith.constant 0 : index
      %c0_13 = arith.constant 0 : index
      %25 = vector.load %arg9[%c0_12, %c0_13] : memref<1x8xf32, #tpu.memory_space<vmem>>, vector<1x8xf32>
      %26 = vector.broadcast %25 : vector<1x8xf32> to vector<512x8xf32>
      %27 = arith.subf %2, %26 : vector<512x8xf32>
      %cst_14 = arith.constant 0.000000e+00 : f32
      %28 = vector.shape_cast %24 : vector<512x1xi1> to vector<512x1xi1>
      %29 = vector.broadcast %28 : vector<512x1xi1> to vector<512x8xi1>
      %30 = vector.broadcast %cst_14 : f32 to vector<512x8xf32>
      %31 = arith.select %29, %27, %30 : vector<512x8xi1>, vector<512x8xf32>
      %c0_15 = arith.constant 0 : index
      %c0_16 = arith.constant 0 : index
      %32 = vector.load %arg7[%c0_15, %c0_16] : memref<1x8xf32, #tpu.memory_space<vmem>>, vector<1x8xf32>
      %cst_17 = arith.constant dense<0.000000e+00> : vector<8xf32>
      %33 = vector.multi_reduction <add>, %31, %cst_17 [0] : vector<512x8xf32> to vector<8xf32>
      %34 = vector.shape_cast %33 : vector<8xf32> to vector<1x8xf32>
      %35 = arith.addf %32, %34 : vector<1x8xf32>
      %c0_18 = arith.constant 0 : index
      %c0_19 = arith.constant 0 : index
      %36 = vector.load %arg7[%c0_18, %c0_19] : memref<1x8xf32, #tpu.memory_space<vmem>>, vector<1x8xf32>
      tpu.vector_store %arg7[%c0_18, %c0_19], %35 {strides = array<i32>} : memref<1x8xf32, #tpu.memory_space<vmem>>, vector<1x8xf32>,
      %c0_20 = arith.constant 0 : index
      %c0_21 = arith.constant 0 : index
      %37 = vector.load %arg8[%c0_20, %c0_21] : memref<1x8xf32, #tpu.memory_space<vmem>>, vector<1x8xf32>
      %38 = arith.mulf %31, %31 : vector<512x8xf32>
      %cst_22 = arith.constant dense<0.000000e+00> : vector<8xf32>
      %39 = vector.multi_reduction <add>, %38, %cst_22 [0] : vector<512x8xf32> to vector<8xf32>
      %40 = vector.shape_cast %39 : vector<8xf32> to vector<1x8xf32>
      %41 = arith.addf %37, %40 : vector<1x8xf32>
      %c0_23 = arith.constant 0 : index
      %c0_24 = arith.constant 0 : index
      %42 = vector.load %arg8[%c0_23, %c0_24] : memref<1x8xf32, #tpu.memory_space<vmem>>, vector<1x8xf32>
      tpu.vector_store %arg8[%c0_23, %c0_24], %41 {strides = array<i32>} : memref<1x8xf32, #tpu.memory_space<vmem>>, vector<1x8xf32>,
    } else {
    }
    %c0_i32_7 = arith.constant 0 : i32
    %11 = arith.cmpi eq, %arg0, %c0_i32_7 : i32
    %c0_i32_8 = arith.constant 0 : i32
    %12 = arith.cmpi eq, %arg1, %c0_i32_8 : i32
    %13 = arith.andi %11, %12 : i1
    %14 = arith.extui %13 : i1 to i32
    %c0_i32_9 = arith.constant 0 : i32
    %15 = arith.cmpi ne, %14, %c0_i32_9 : i32
    scf.if %15 {
      %c0_11 = arith.constant 0 : index
      %c0_12 = arith.constant 0 : index
      %19 = vector.load %arg7[%c0_11, %c0_12] : memref<1x8xf32, #tpu.memory_space<vmem>>, vector<1x8xf32>
      %cst_13 = arith.constant 0.001953125 : f32
      %20 = vector.broadcast %cst_13 : f32 to vector<1x8xf32>
      %21 = arith.mulf %19, %20 : vector<1x8xf32>
      %c0_14 = arith.constant 0 : index
      %c0_15 = arith.constant 0 : index
      %22 = vector.load %arg8[%c0_14, %c0_15] : memref<1x8xf32, #tpu.memory_space<vmem>>, vector<1x8xf32>
      %cst_16 = arith.constant 0.001953125 : f32
      %23 = vector.broadcast %cst_16 : f32 to vector<1x8xf32>
      %24 = arith.mulf %22, %23 : vector<1x8xf32>
      %25 = arith.mulf %21, %21 : vector<1x8xf32>
      %26 = arith.subf %24, %25 : vector<1x8xf32>
      %cst_17 = arith.constant 0.000000e+00 : f32
      %27 = vector.broadcast %cst_17 : f32 to vector<1x8xf32>
      %28 = arith.maximumf %26, %27 : vector<1x8xf32>
      %c0_18 = arith.constant 0 : index
      %c0_19 = arith.constant 0 : index
      %29 = vector.load %arg9[%c0_18, %c0_19] : memref<1x8xf32, #tpu.memory_space<vmem>>, vector<1x8xf32>
      %30 = arith.addf %21, %29 : vector<1x8xf32>
      %c0_20 = arith.constant 0 : index
      %c0_21 = arith.constant 0 : index
      %31 = vector.load %arg4[%c0_20, %c0_21] : memref<1x8xf32, #tpu.memory_space<vmem>>, vector<1x8xf32>
      %cst_22 = arith.constant 9.99999974E-6 : f32
      %32 = vector.broadcast %cst_22 : f32 to vector<1x8xf32>
      %33 = arith.addf %28, %32 : vector<1x8xf32>
      %34 = math.rsqrt %33 : vector<1x8xf32>
      %35 = arith.mulf %31, %34 : vector<1x8xf32>
      %c0_23 = arith.constant 0 : index
      %c0_24 = arith.constant 0 : index
      %36 = vector.load %arg10[%c0_23, %c0_24] : memref<1x8xf32, #tpu.memory_space<vmem>>, vector<1x8xf32>
      tpu.vector_store %arg10[%c0_23, %c0_24], %35 {strides = array<i32>} : memref<1x8xf32, #tpu.memory_space<vmem>>, vector<1x8xf32>,
      %c0_25 = arith.constant 0 : index
      %c0_26 = arith.constant 0 : index
      %37 = vector.load %arg5[%c0_25, %c0_26] : memref<1x8xf32, #tpu.memory_space<vmem>>, vector<1x8xf32>
      %38 = arith.mulf %30, %35 : vector<1x8xf32>
      %39 = arith.subf %37, %38 : vector<1x8xf32>
      %c0_27 = arith.constant 0 : index
      %c0_28 = arith.constant 0 : index
      %40 = vector.load %arg11[%c0_27, %c0_28] : memref<1x8xf32, #tpu.memory_space<vmem>>, vector<1x8xf32>
      tpu.vector_store %arg11[%c0_27, %c0_28], %39 {strides = array<i32>} : memref<1x8xf32, #tpu.memory_space<vmem>>, vector<1x8xf32>,
    } else {
    }
    %c1_i32 = arith.constant 1 : i32
    %16 = arith.cmpi eq, %arg0, %c1_i32 : i32
    %17 = arith.extui %16 : i1 to i32
    %c0_i32_10 = arith.constant 0 : i32
    %18 = arith.cmpi ne, %17, %c0_i32_10 : i32
    scf.if %18 {
      %c0_11 = arith.constant 0 : index
      %c0_12 = arith.constant 0 : index
      %19 = vector.load %arg10[%c0_11, %c0_12] : memref<1x8xf32, #tpu.memory_space<vmem>>, vector<1x8xf32>
      %20 = vector.broadcast %19 : vector<1x8xf32> to vector<512x8xf32>
      %21 = arith.mulf %2, %20 : vector<512x8xf32>
      %c0_13 = arith.constant 0 : index
      %c0_14 = arith.constant 0 : index
      %22 = vector.load %arg11[%c0_13, %c0_14] : memref<1x8xf32, #tpu.memory_space<vmem>>, vector<1x8xf32>
      %23 = vector.broadcast %22 : vector<1x8xf32> to vector<512x8xf32>
      %24 = arith.addf %21, %23 : vector<512x8xf32>
      %c0_15 = arith.constant 0 : index
      %c0_16 = arith.constant 0 : index
      %25 = vector.load %arg6[%c0_15, %c0_16] : memref<512x8xf32, #tpu.memory_space<vmem>>, vector<512x8xf32>
      tpu.vector_store %arg6[%c0_15, %c0_16], %24 {strides = array<i32>} : memref<512x8xf32, #tpu.memory_space<vmem>>, vector<512x8xf32>,
    } else {
    }
    return
  }
  func.func @transform_0(%arg0: i32, %arg1: i32) -> (i32, i32) {
    %c0_i32 = arith.constant 0 : i32
    %c0_i32_0 = arith.constant 0 : i32
    return %arg1, %c0_i32 : i32, i32
  }
  func.func @transform_1(%arg0: i32, %arg1: i32) -> (i32, i32) {
    %c0_i32 = arith.constant 0 : i32
    %c0_i32_0 = arith.constant 0 : i32
    %c0_i32_1 = arith.constant 0 : i32
    return %c0_i32, %c0_i32_0 : i32, i32
  }
  func.func @transform_2(%arg0: i32, %arg1: i32) -> (i32, i32) {
    %c0_i32 = arith.constant 0 : i32
    %c0_i32_0 = arith.constant 0 : i32
    %c0_i32_1 = arith.constant 0 : i32
    return %c0_i32, %c0_i32_0 : i32, i32
  }
  func.func @transform_3(%arg0: i32, %arg1: i32) -> (i32, i32) {
    %c0_i32 = arith.constant 0 : i32
    %c0_i32_0 = arith.constant 0 : i32
    %c0_i32_1 = arith.constant 0 : i32
    return %c0_i32, %c0_i32_0 : i32, i32
  }
  func.func @transform_4(%arg0: i32, %arg1: i32) -> (i32, i32) {
    %0 = arith.muli %arg0, %arg1 : i32
    %c0_i32 = arith.constant 0 : i32
    %c0_i32_0 = arith.constant 0 : i32
    return %0, %c0_i32 : i32, i32
  }
}

</mosaic_0001>

<llo_original>
// kernel: tpu_custom_call.1
$region0: #{tpu_custom_call.1}
  #allocation0 [shape = 'u32[]', space=smem, size = 0x4, offset = 0x4, fixed_abs, tag = 'smem constant byte address 0x4 - core index']
  #allocation1 [shape = 'u32[144,128]{1,0:T(1,128)}', space=vmem, size = 0x12000, scoped, tag = 'internal scratch']
  #allocation2 [shape = 'f32[1,8]{1,0:T(1,128)}', space=vmem, size = 0x200, scoped, tag = 'scratch operand']
  #allocation3 [shape = 'f32[1,8]{1,0:T(1,128)}', space=vmem, size = 0x200, scoped, tag = 'scratch operand']
  #allocation4 [shape = 'f32[1,8]{1,0:T(1,128)}', space=vmem, size = 0x200, scoped, tag = 'scratch operand']
  #allocation5 [shape = 'f32[1,8]{1,0:T(1,128)}', space=vmem, size = 0x200, scoped, tag = 'scratch operand']
  #allocation6 [shape = 'f32[1,8]{1,0:T(1,128)}', space=vmem, size = 0x200, scoped, tag = 'scratch operand']
  %s0 = inlined_call_operand.vmem [shape: bf16[512,36], index: 0, kind: input, shape index: {}]
  %s1 = inlined_call_operand.vmem [shape: bf16[36,8], index: 1, kind: input, shape index: {}]
  %s2 = inlined_call_operand.vmem [shape: f32[1,8], index: 2, kind: input, shape index: {}]
  %s3 = inlined_call_operand.vmem [shape: f32[1,8], index: 3, kind: input, shape index: {}]
  %s4 = inlined_call_operand.vmem [shape: f32[512,8], index: 4, kind: output, shape index: {}]
  %s5 = sld [smem:[#allocation0]]
  $region65: #{tpu_custom_call.1} parent=0
    _
  %s7 = ssub.s32 1, %s5
  %s8 = scalar_select 0, %s7, %s5
  loop: start=0, step=1, limit=4
  $region2: #{tpu_custom_call.1} parent=0 // loop_pre_header
    _
  $region3: #{tpu_custom_call.1} parent=0 // loop_header
    %s10 = sphi 0, %s14
    %p11 = scmp.ge.s32.totalorder %s10, 4
    %s17 = sphi 0, %s29
    %s18 = sphi 0, %s25
    %s19 = sphi 0, %s17
    %s20 = sphi 0, %s18
    %s21 = sphi 0, %s19
    %s22 = sphi 0, %s20
    %s32 = sphi 0, %s34
    %s35 = sphi 0, %s32
    %s36 = sphi 0, %s35
    %s52 = sphi 0, %s36
    %s56 = sphi 0, %s56
    %s58 = sphi 0, %s56
    %s59 = sphi 0, %s58
    %s73 = sphi 0, %s59
    %s77 = sphi 0, %s77
    %s79 = sphi 0, %s77
    %s80 = sphi 0, %s79
    %s94 = sphi 0, %s80
    %s98 = sphi 0, %s98
    %s100 = sphi 0, %s98
    %s101 = sphi 0, %s100
    %s115 = sphi 0, %s101
    %s123 = sphi 0, %s125
    %s126 = sphi 0, %s123
    %s127 = sphi 0, %s126
    %s143 = sphi 0, %s127
  $region4: #{tpu_custom_call.1} parent=0 // loop_header_branch
    %13 = sbr.rel (%p11) target = $region8
  $region5: #{tpu_custom_call.1} parent=0 // loop_body
    %s15 = ssub.s32 %s10, 1
    %s16 = ssub.s32 %s10, 2
    %s23 = sadd.s32 1, %s18
    %p24 = scmp.ge.s32.totalorder %s23, 1
    %s25 = scalar_select %p24, 0, %s23
    %s26 = sadd.s32 1, %s17
    %s27 = scalar_select %p24, %s26, %s17
    %p28 = scmp.ge.s32.totalorder %s27, 2
    %s29 = scalar_select %p28, 0, %s27
    %s30 = ssub.s32 %s18, %s25
    %p31 = scmp.eq.s32.totalorder %s30, 0
    %s33 = sadd.s32 %s32, 1
    %s34 = scalar_select %p31, %s32, %s33
    %p37 = pneg %p31
    %p38 = scmp.eq.s32.totalorder %s10, 1
    %p39 = por %p37, %p38
    %p40 = scmp.ne.s32.totalorder %s32, %s35
    %p41 = scmp.eq.s32.totalorder %s10, 0
    %p42 = por %p40, %p41
    %p43 = scmp.ne.s32.totalorder %s32, %s35
    %p44 = scmp.eq.s32.totalorder %s15, 1
    %p45 = por %p43, %p44
    %p46 = scmp.ne.s32.totalorder %s35, %s36
    %p47 = scmp.eq.s32.totalorder %s15, 0
    %p48 = por %p46, %p47
    %p49 = scmp.ne.s32.totalorder %s35, %s36
    %p50 = scmp.eq.s32.totalorder %s16, 1
    %p51 = por %p49, %p50
    %p53 = scmp.ne.s32.totalorder %s36, %s52
    %p54 = scmp.eq.s32.totalorder %s16, 0
    %p55 = por %p53, %p54
    %s57 = sadd.s32 %s56, 1
    %p60 = scmp.eq.s32.totalorder %s10, 1
    %p61 = scmp.ne.s32.totalorder %s56, %s58
    %p62 = scmp.eq.s32.totalorder %s10, 0
    %p63 = por %p61, %p62
    %p64 = scmp.ne.s32.totalorder %s56, %s58
    %p65 = scmp.eq.s32.totalorder %s15, 1
    %p66 = por %p64, %p65
    %p67 = scmp.ne.s32.totalorder %s58, %s59
    %p68 = scmp.eq.s32.totalorder %s15, 0
    %p69 = por %p67, %p68
    %p70 = scmp.ne.s32.totalorder %s58, %s59
    %p71 = scmp.eq.s32.totalorder %s16, 1
    %p72 = por %p70, %p71
    %p74 = scmp.ne.s32.totalorder %s59, %s73
    %p75 = scmp.eq.s32.totalorder %s16, 0
    %p76 = por %p74, %p75
    %s78 = sadd.s32 %s77, 1
    %p81 = scmp.eq.s32.totalorder %s10, 1
    %p82 = scmp.ne.s32.totalorder %s77, %s79
    %p83 = scmp.eq.s32.totalorder %s10, 0
    %p84 = por %p82, %p83
    %p85 = scmp.ne.s32.totalorder %s77, %s79
    %p86 = scmp.eq.s32.totalorder %s15, 1
    %p87 = por %p85, %p86
    %p88 = scmp.ne.s32.totalorder %s79, %s80
    %p89 = scmp.eq.s32.totalorder %s15, 0
    %p90 = por %p88, %p89
    %p91 = scmp.ne.s32.totalorder %s79, %s80
    %p92 = scmp.eq.s32.totalorder %s16, 1
    %p93 = por %p91, %p92
    %p95 = scmp.ne.s32.totalorder %s80, %s94
    %p96 = scmp.eq.s32.totalorder %s16, 0
    %p97 = por %p95, %p96
    %s99 = sadd.s32 %s98, 1
    %p102 = scmp.eq.s32.totalorder %s10, 1
    %p103 = scmp.ne.s32.totalorder %s98, %s100
    %p104 = scmp.eq.s32.totalorder %s10, 0
    %p105 = por %p103, %p104
    %p106 = scmp.ne.s32.totalorder %s98, %s100
    %p107 = scmp.eq.s32.totalorder %s15, 1
    %p108 = por %p106, %p107
    %p109 = scmp.ne.s32.totalorder %s100, %s101
    %p110 = scmp.eq.s32.totalorder %s15, 0
    %p111 = por %p109, %p110
    %p112 = scmp.ne.s32.totalorder %s100, %s101
    %p113 = scmp.eq.s32.totalorder %s16, 1
    %p114 = por %p112, %p113
    %p116 = scmp.ne.s32.totalorder %s101, %s115
    %p117 = scmp.eq.s32.totalorder %s16, 0
    %p118 = por %p116, %p117
    %s119 = smul.u32 %s17, %s18
    %s120 = smul.u32 %s29, %s25
    %s121 = ssub.s32 %s119, %s120
    %p122 = scmp.eq.s32.totalorder %s121, 0
    %s124 = sadd.s32 %s123, 1
    %s125 = scalar_select %p122, %s123, %s124
    %p128 = pneg %p122
    %p129 = scmp.eq.s32.totalorder %s10, 1
    %p130 = por %p128, %p129
    %p131 = scmp.ne.s32.totalorder %s123, %s126
    %p132 = scmp.eq.s32.totalorder %s10, 0
    %p133 = por %p131, %p132
    %p134 = scmp.ne.s32.totalorder %s123, %s126
    %p135 = scmp.eq.s32.totalorder %s15, 1
    %p136 = por %p134, %p135
    %p137 = scmp.ne.s32.totalorder %s126, %s127
    %p138 = scmp.eq.s32.totalorder %s15, 0
    %p139 = por %p137, %p138
    %p140 = scmp.ne.s32.totalorder %s126, %s127
    %p141 = scmp.eq.s32.totalorder %s16, 1
    %p142 = por %p140, %p141
    %p144 = scmp.ne.s32.totalorder %s127, %s143
    %p145 = scmp.eq.s32.totalorder %s16, 0
    %p146 = por %p144, %p145
    %p147 = scmp.le.s32.totalorder 1, %s10
    %p148 = scmp.lt.s32.totalorder %s10, 3
    %p149 = pnand %p147, %p148
    %p150 = pneg %p149
    // Predicated region
    $region9: #{tpu_custom_call.1} parent=5 // pred_check
      _
    $region10: #{tpu_custom_call.1} parent=5 // pred_check_branch
      %152 = sbr.rel (%p149) target = $region12
    $region11: #{tpu_custom_call.1} parent=5 // pred_region
      %s153 = ssub.s32 %s10, 1
      // Predicated region
      $region13: #{tpu_custom_call.1} parent=11 // pred_check
        %p154 = pneg %p48
      $region14: #{tpu_custom_call.1} parent=11 // pred_check_branch
        %156 = sbr.rel (%p154) target = $region16
      $region15: #{tpu_custom_call.1} parent=11 // pred_region
        %s157 = smul.u32 64, %s20
        %p158 = scmp.lt.s32.totalorder %s157, 63
        %s159 = scalar_select %p158, %s157, 63
        %s160 = smul.addr %s159, 4
        %s161 = scalar_lea.vmem %s0, %s160
        %s162 = smul.u32 64, %s20
      $region16: #{tpu_custom_call.1} parent=11 // pred_fallthru
        _
      // Predicated region
      $region17: #{tpu_custom_call.1} parent=11 // pred_check
        %p163 = pneg %p69
      $region18: #{tpu_custom_call.1} parent=11 // pred_check_branch
        %165 = sbr.rel (%p163) target = $region20
      $region19: #{tpu_custom_call.1} parent=11 // pred_region
        _
      $region20: #{tpu_custom_call.1} parent=11 // pred_fallthru
        _
      // Predicated region
      $region21: #{tpu_custom_call.1} parent=11 // pred_check
        %p166 = pneg %p90
      $region22: #{tpu_custom_call.1} parent=11 // pred_check_branch
        %168 = sbr.rel (%p166) target = $region24
      $region23: #{tpu_custom_call.1} parent=11 // pred_region
        _
      $region24: #{tpu_custom_call.1} parent=11 // pred_fallthru
        _
      // Predicated region
      $region25: #{tpu_custom_call.1} parent=11 // pred_check
        %p169 = pneg %p111
      $region26: #{tpu_custom_call.1} parent=11 // pred_check_branch
        %171 = sbr.rel (%p169) target = $region28
      $region27: #{tpu_custom_call.1} parent=11 // pred_region
        _
      $region28: #{tpu_custom_call.1} parent=11 // pred_fallthru
        _
    $region12: #{tpu_custom_call.1} parent=5 // pred_fallthru
      _
    %p172 = scmp.lt.s32.totalorder %s10, 2
    // Predicated region
    $region29: #{tpu_custom_call.1} parent=5 // pred_check
      %p173 = pneg %p172
    $region30: #{tpu_custom_call.1} parent=5 // pred_check_branch
      %175 = sbr.rel (%p173) target = $region32
    $region31: #{tpu_custom_call.1} parent=5 // pred_region
      _
    $region32: #{tpu_custom_call.1} parent=5 // pred_fallthru
      _
    %p176 = scmp.le.s32.totalorder 1, %s10
    %p177 = scmp.lt.s32.totalorder %s10, 3
    %p178 = pnand %p176, %p177
    %p179 = pneg %p178
    // Predicated region
    $region33: #{tpu_custom_call.1} parent=5 // pred_check
      _
    $region34: #{tpu_custom_call.1} parent=5 // pred_check_branch
      %181 = sbr.rel (%p178) target = $region36
    $region35: #{tpu_custom_call.1} parent=5 // pred_region
      %s182 = ssub.s32 %s10, 1
      %s183 = smul.u32 64, %s20
      %p184 = scmp.lt.s32.totalorder %s183, 63
      %s185 = scalar_select %p184, %s183, 63
      %s186 = smul.addr %s185, 4
      %s187 = scalar_lea.vmem %s0, %s186
      %p188 = pneg %p48
      %p189 = pneg %p45
      %p190 = pneg %p69
      %p191 = pneg %p66
      %p192 = pneg %p90
      %p193 = pneg %p87
      %p194 = pneg %p111
      %p195 = pneg %p108
      %p196 = pneg %p139
      %p197 = pneg %p136
      %s198 = smul.u32 %s19, %s20
      %s199 = smul.u32 64, %s198
      %p200 = scmp.lt.s32.totalorder %s199, 63
      %s201 = scalar_select %p200, %s199, 63
      %s202 = smul.addr %s201, 8
      %s203 = scalar_lea.vmem %s4, %s202
      %s204 = smul.u32 64, %s20
      %p205 = scmp.lt.s32.totalorder %s204, 63
      %s206 = scalar_select %p205, %s204, 63
      %s207 = smul.addr %s206, 4
      %s208 = scalar_lea.vmem %s0, %s207
      %s209 = smul.u32 64, %s20
      %s210 = smul.u32 %s19, %s20
      %s211 = smul.u32 64, %s210
      %p212 = scmp.lt.s32.totalorder %s211, 63
      %s213 = scalar_select %p212, %s211, 63
      %s214 = smul.addr %s213, 8
      %s215 = scalar_lea.vmem %s4, %s214
      %s216 = smul.u32 %s19, %s20
      %s217 = smul.u32 64, %s216
      %v219 = vld [vmem:[%s208] sm:$0xf]
      %v220 = vld [vmem:[%s208 + $0x4] sm:$0xf]
      %v221 = vld [vmem:[%s208 + $0x8] sm:$0xf]
      %v222 = vld [vmem:[%s208 + $0xc] sm:$0xf]
      %v223 = vld [vmem:[%s208 + $0x10] sm:$0xf]
      %v224 = vld [vmem:[%s208 + $0x14] sm:$0xf]
      %v225 = vld [vmem:[%s208 + $0x18] sm:$0xf]
      %v226 = vld [vmem:[%s208 + $0x1c] sm:$0xf]
      %v227 = vld [vmem:[%s208 + $0x20] sm:$0xf]
      %v228 = vld [vmem:[%s208 + $0x24] sm:$0xf]
      %v229 = vld [vmem:[%s208 + $0x28] sm:$0xf]
      %v230 = vld [vmem:[%s208 + $0x2c] sm:$0xf]
      %v231 = vld [vmem:[%s208 + $0x30] sm:$0xf]
      %v232 = vld [vmem:[%s208 + $0x34] sm:$0xf]
      %v233 = vld [vmem:[%s208 + $0x38] sm:$0xf]
      %v234 = vld [vmem:[%s208 + $0x3c] sm:$0xf]
      %v235 = vld [vmem:[%s208 + $0x40] sm:$0xf]
      %v236 = vld [vmem:[%s208 + $0x44] sm:$0xf]
      %v237 = vld [vmem:[%s208 + $0x48] sm:$0xf]
      %v238 = vld [vmem:[%s208 + $0x4c] sm:$0xf]
      %v239 = vld [vmem:[%s208 + $0x50] sm:$0xf]
      %v240 = vld [vmem:[%s208 + $0x54] sm:$0xf]
      %v241 = vld [vmem:[%s208 + $0x58] sm:$0xf]
      %v242 = vld [vmem:[%s208 + $0x5c] sm:$0xf]
      %v243 = vld [vmem:[%s208 + $0x60] sm:$0xf]
      %v244 = vld [vmem:[%s208 + $0x64] sm:$0xf]
      %v245 = vld [vmem:[%s208 + $0x68] sm:$0xf]
      %v246 = vld [vmem:[%s208 + $0x6c] sm:$0xf]
      %v247 = vld [vmem:[%s208 + $0x70] sm:$0xf]
      %v248 = vld [vmem:[%s208 + $0x74] sm:$0xf]
      %v249 = vld [vmem:[%s208 + $0x78] sm:$0xf]
      %v250 = vld [vmem:[%s208 + $0x7c] sm:$0xf]
      %v251 = vld [vmem:[%s208 + $0x80] sm:$0xf]
      %v252 = vld [vmem:[%s208 + $0x84] sm:$0xf]
      %v253 = vld [vmem:[%s208 + $0x88] sm:$0xf]
      %v254 = vld [vmem:[%s208 + $0x8c] sm:$0xf]
      %v255 = vld [vmem:[%s208 + $0x90] sm:$0xf]
      %v256 = vld [vmem:[%s208 + $0x94] sm:$0xf]
      %v257 = vld [vmem:[%s208 + $0x98] sm:$0xf]
      %v258 = vld [vmem:[%s208 + $0x9c] sm:$0xf]
      %v259 = vld [vmem:[%s208 + $0xa0] sm:$0xf]
      %v260 = vld [vmem:[%s208 + $0xa4] sm:$0xf]
      %v261 = vld [vmem:[%s208 + $0xa8] sm:$0xf]
      %v262 = vld [vmem:[%s208 + $0xac] sm:$0xf]
      %v263 = vld [vmem:[%s208 + $0xb0] sm:$0xf]
      %v264 = vld [vmem:[%s208 + $0xb4] sm:$0xf]
      %v265 = vld [vmem:[%s208 + $0xb8] sm:$0xf]
      %v266 = vld [vmem:[%s208 + $0xbc] sm:$0xf]
      %v267 = vld [vmem:[%s208 + $0xc0] sm:$0xf]
      %v268 = vld [vmem:[%s208 + $0xc4] sm:$0xf]
      %v269 = vld [vmem:[%s208 + $0xc8] sm:$0xf]
      %v270 = vld [vmem:[%s208 + $0xcc] sm:$0xf]
      %v271 = vld [vmem:[%s208 + $0xd0] sm:$0xf]
      %v272 = vld [vmem:[%s208 + $0xd4] sm:$0xf]
      %v273 = vld [vmem:[%s208 + $0xd8] sm:$0xf]
      %v274 = vld [vmem:[%s208 + $0xdc] sm:$0xf]
      %v275 = vld [vmem:[%s208 + $0xe0] sm:$0xf]
      %v276 = vld [vmem:[%s208 + $0xe4] sm:$0xf]
      %v277 = vld [vmem:[%s208 + $0xe8] sm:$0xf]
      %v278 = vld [vmem:[%s208 + $0xec] sm:$0xf]
      %v279 = vld [vmem:[%s208 + $0xf0] sm:$0xf]
      %v280 = vld [vmem:[%s208 + $0xf4] sm:$0xf]
      %v281 = vld [vmem:[%s208 + $0xf8] sm:$0xf]
      %v282 = vld [vmem:[%s208 + $0xfc] sm:$0xf]
      %v283 = vld [vmem:[%s1] sm:$0xf]
      %v284 = vld [vmem:[%s1 + $0x4] sm:$0xf]
      %v285 = vld [vmem:[%s1 + $0x8] sm:$0xf]
      %v286 = vld [vmem:[%s1 + $0xc] sm:$0xf]
      %v287 = vld [vmem:[%s1 + $0x10] sm:$0x3]
      %v352 = vunpack.c.l.b16 %v219
      %v353 = vunpack.c.l.b16 %v220
      %v354 = vunpack.c.l.b16 %v221
      %v355 = vunpack.c.l.b16 %v222
      %v356 = vunpack.c.l.b16 %v223
      %v357 = vunpack.c.l.b16 %v224
      %v358 = vunpack.c.l.b16 %v225
      %v359 = vunpack.c.l.b16 %v226
      %v360 = vunpack.c.l.b16 %v227
      %v361 = vunpack.c.l.b16 %v228
      %v362 = vunpack.c.l.b16 %v229
      %v363 = vunpack.c.l.b16 %v230
      %v364 = vunpack.c.l.b16 %v231
      %v365 = vunpack.c.l.b16 %v232
      %v366 = vunpack.c.l.b16 %v233
      %v367 = vunpack.c.l.b16 %v234
      %v368 = vunpack.c.l.b16 %v235
      %v369 = vunpack.c.l.b16 %v236
      %v370 = vunpack.c.l.b16 %v237
      %v371 = vunpack.c.l.b16 %v238
      %v372 = vunpack.c.l.b16 %v239
      %v373 = vunpack.c.l.b16 %v240
      %v374 = vunpack.c.l.b16 %v241
      %v375 = vunpack.c.l.b16 %v242
      %v376 = vunpack.c.l.b16 %v243
      %v377 = vunpack.c.l.b16 %v244
      %v378 = vunpack.c.l.b16 %v245
      %v379 = vunpack.c.l.b16 %v246
      %v380 = vunpack.c.l.b16 %v247
      %v381 = vunpack.c.l.b16 %v248
      %v382 = vunpack.c.l.b16 %v249
      %v383 = vunpack.c.l.b16 %v250
      %v384 = vunpack.c.l.b16 %v251
      %v385 = vunpack.c.l.b16 %v252
      %v386 = vunpack.c.l.b16 %v253
      %v387 = vunpack.c.l.b16 %v254
      %v388 = vunpack.c.l.b16 %v255
      %v389 = vunpack.c.l.b16 %v256
      %v390 = vunpack.c.l.b16 %v257
      %v391 = vunpack.c.l.b16 %v258
      %v392 = vunpack.c.l.b16 %v259
      %v393 = vunpack.c.l.b16 %v260
      %v394 = vunpack.c.l.b16 %v261
      %v395 = vunpack.c.l.b16 %v262
      %v396 = vunpack.c.l.b16 %v263
      %v397 = vunpack.c.l.b16 %v264
      %v398 = vunpack.c.l.b16 %v265
      %v399 = vunpack.c.l.b16 %v266
      %v400 = vunpack.c.l.b16 %v267
      %v401 = vunpack.c.l.b16 %v268
      %v402 = vunpack.c.l.b16 %v269
      %v403 = vunpack.c.l.b16 %v270
      %v404 = vunpack.c.l.b16 %v271
      %v405 = vunpack.c.l.b16 %v272
      %v406 = vunpack.c.l.b16 %v273
      %v407 = vunpack.c.l.b16 %v274
      %v408 = vunpack.c.l.b16 %v275
      %v409 = vunpack.c.l.b16 %v276
      %v410 = vunpack.c.l.b16 %v277
      %v411 = vunpack.c.l.b16 %v278
      %v412 = vunpack.c.l.b16 %v279
      %v413 = vunpack.c.l.b16 %v280
      %v414 = vunpack.c.l.b16 %v281
      %v415 = vunpack.c.l.b16 %v282
      %v416 = vpack.c.b16 %v353, %v352
      %v417 = vpack.c.b16 %v355, %v354
      %v418 = vpack.c.b16 %v357, %v356
      %v419 = vpack.c.b16 %v359, %v358
      %v420 = vpack.c.b16 %v361, %v360
      %v421 = vpack.c.b16 %v363, %v362
      %v422 = vpack.c.b16 %v365, %v364
      %v423 = vpack.c.b16 %v367, %v366
      %v424 = vpack.c.b16 %v369, %v368
      %v425 = vpack.c.b16 %v371, %v370
      %v426 = vpack.c.b16 %v373, %v372
      %v427 = vpack.c.b16 %v375, %v374
      %v428 = vpack.c.b16 %v377, %v376
      %v429 = vpack.c.b16 %v379, %v378
      %v430 = vpack.c.b16 %v381, %v380
      %v431 = vpack.c.b16 %v383, %v382
      %v432 = vpack.c.b16 %v385, %v384
      %v433 = vpack.c.b16 %v387, %v386
      %v434 = vpack.c.b16 %v389, %v388
      %v435 = vpack.c.b16 %v391, %v390
      %v436 = vpack.c.b16 %v393, %v392
      %v437 = vpack.c.b16 %v395, %v394
      %v438 = vpack.c.b16 %v397, %v396
      %v439 = vpack.c.b16 %v399, %v398
      %v440 = vpack.c.b16 %v401, %v400
      %v441 = vpack.c.b16 %v403, %v402
      %v442 = vpack.c.b16 %v405, %v404
      %v443 = vpack.c.b16 %v407, %v406
      %v444 = vpack.c.b16 %v409, %v408
      %v445 = vpack.c.b16 %v411, %v410
      %v446 = vpack.c.b16 %v413, %v412
      %v447 = vpack.c.b16 %v415, %v414
      %v453 = vunpack.c.l.b16 %v283
      %v454 = vunpack.c.l.b16 %v284
      %v455 = vunpack.c.l.b16 %v285
      %v456 = vunpack.c.l.b16 %v286
      %v457 = vunpack.c.l.b16 %v287
      %v458 = vpack.c.b16 %v454, %v453
      %v459 = vpack.c.b16 %v456, %v455
      %v460 = vpack.c.b16 %v457, %v457
      %vm463 = vcmask 293888
      %v465 = vsel %vm463, %v416, 0
      %v468 = vsel %vm463, %v417, 0
      %v471 = vsel %vm463, %v418, 0
      %v474 = vsel %vm463, %v419, 0
      %v477 = vsel %vm463, %v420, 0
      %v480 = vsel %vm463, %v421, 0
      %v483 = vsel %vm463, %v422, 0
      %v486 = vsel %vm463, %v423, 0
      %v489 = vsel %vm463, %v424, 0
      %v492 = vsel %vm463, %v425, 0
      %v495 = vsel %vm463, %v426, 0
      %v498 = vsel %vm463, %v427, 0
      %v501 = vsel %vm463, %v428, 0
      %v504 = vsel %vm463, %v429, 0
      %v507 = vsel %vm463, %v430, 0
      %v510 = vsel %vm463, %v431, 0
      %v513 = vsel %vm463, %v432, 0
      %v516 = vsel %vm463, %v433, 0
      %v519 = vsel %vm463, %v434, 0
      %v522 = vsel %vm463, %v435, 0
      %v525 = vsel %vm463, %v436, 0
      %v528 = vsel %vm463, %v437, 0
      %v531 = vsel %vm463, %v438, 0
      %v534 = vsel %vm463, %v439, 0
      %v537 = vsel %vm463, %v440, 0
      %v540 = vsel %vm463, %v441, 0
      %v543 = vsel %vm463, %v442, 0
      %v546 = vsel %vm463, %v443, 0
      %v549 = vsel %vm463, %v444, 0
      %v552 = vsel %vm463, %v445, 0
      %v555 = vsel %vm463, %v446, 0
      %v558 = vsel %vm463, %v447, 0
      %vm560 = vcmask 1041408
      %v562 = vsel %vm560, %v460, 0
      %564 = vmatprep.subr.bf16.mxu0 0
      %565 = vmatpush1.bf16.msra.mxu0 %v458
      %566 = vmatprep.subr.bf16.mxu0 0
      %567 = vmatpush1.bf16.msra.mxu0 %v459
      %568 = vmatprep.subr.bf16.mxu0 0
      %569 = vmatpush1.bf16.msra.mxu0 %v562
      %570 = vmatprep.subr.bf16.mxu0 0
      %571 = vmatpush1.bf16.msra.mxu0 0
      %572 = vmatprep.subr.bf16.mxu0 0
      %573 = vmatpush1.bf16.msra.mxu0 0
      %574 = vmatprep.subr.bf16.mxu0 0
      %575 = vmatpush1.bf16.msra.mxu0 0
      %576 = vmatprep.subr.bf16.mxu0 0
      %577 = vmatpush1.bf16.msra.mxu0 0
      %578 = vmatprep.subr.bf16.mxu0 0
      %579 = vmatpush1.bf16.msra.mxu0 0
      %580 = vmatprep.subr.bf16.mxu0 0
      %581 = vmatpush1.bf16.msra.mxu0 0
      %582 = vmatprep.subr.bf16.mxu0 0
      %583 = vmatpush1.bf16.msra.mxu0 0
      %584 = vmatprep.subr.bf16.mxu0 0
      %585 = vmatpush1.bf16.msra.mxu0 0
      %586 = vmatprep.subr.bf16.mxu0 0
      %587 = vmatpush1.bf16.msra.mxu0 0
      %588 = vmatprep.subr.bf16.mxu0 0
      %589 = vmatpush1.bf16.msra.mxu0 0
      %590 = vmatprep.subr.bf16.mxu0 0
      %591 = vmatpush1.bf16.msra.mxu0 0
      %592 = vmatprep.subr.bf16.mxu0 0
      %593 = vmatpush1.bf16.msra.mxu0 0
      %594 = vmatprep.subr.bf16.mxu0 0
      %595 = vmatpush1.bf16.msra.mxu0 0
      %596 = vmatprep.mubr.bf16.mxu0 0
      %597 = vmatmul.mubr.bf16.gmra.mrb[0].mxu0 %v465
      %v598 = vpop.f32.mrb[0].mxu0
      %v599 = vadd.f32 0.0, %v598
      %v600 = vpop.f32.mrb[0].mxu0
      %v601 = vpop.f32.mrb[0].mxu0
      %v602 = vadd.f32 0.0, %v601
      %v603 = vpop.f32.mrb[0].mxu0
      %604 = vmatprep.mubr.bf16.mxu0 0
      %605 = vmatmul.mubr.bf16.gmra.mrb[0].mxu0 %v468
      %v606 = vpop.f32.mrb[0].mxu0
      %v607 = vadd.f32 0.0, %v606
      %v608 = vpop.f32.mrb[0].mxu0
      %v609 = vpop.f32.mrb[0].mxu0
      %v610 = vadd.f32 0.0, %v609
      %v611 = vpop.f32.mrb[0].mxu0
      %612 = vmatprep.mubr.bf16.mxu0 0
      %613 = vmatmul.mubr.bf16.gmra.mrb[0].mxu0 %v471
      %v614 = vpop.f32.mrb[0].mxu0
      %v615 = vadd.f32 0.0, %v614
      %v616 = vpop.f32.mrb[0].mxu0
      %v617 = vpop.f32.mrb[0].mxu0
      %v618 = vadd.f32 0.0, %v617
      %v619 = vpop.f32.mrb[0].mxu0
      %620 = vmatprep.mubr.bf16.mxu0 0
      %621 = vmatmul.mubr.bf16.gmra.mrb[0].mxu0 %v474
      %v622 = vpop.f32.mrb[0].mxu0
      %v623 = vadd.f32 0.0, %v622
      %v624 = vpop.f32.mrb[0].mxu0
      %v625 = vpop.f32.mrb[0].mxu0
      %v626 = vadd.f32 0.0, %v625
      %v627 = vpop.f32.mrb[0].mxu0
      %628 = vmatprep.mubr.bf16.mxu0 0
      %629 = vmatmul.mubr.bf16.gmra.mrb[0].mxu0 %v477
      %v630 = vpop.f32.mrb[0].mxu0
      %v631 = vadd.f32 0.0, %v630
      %v632 = vpop.f32.mrb[0].mxu0
      %v633 = vpop.f32.mrb[0].mxu0
      %v634 = vadd.f32 0.0, %v633
      %v635 = vpop.f32.mrb[0].mxu0
      %636 = vmatprep.mubr.bf16.mxu0 0
      %637 = vmatmul.mubr.bf16.gmra.mrb[0].mxu0 %v480
      %v638 = vpop.f32.mrb[0].mxu0
      %v639 = vadd.f32 0.0, %v638
      %v640 = vpop.f32.mrb[0].mxu0
      %v641 = vpop.f32.mrb[0].mxu0
      %v642 = vadd.f32 0.0, %v641
      %v643 = vpop.f32.mrb[0].mxu0
      %644 = vmatprep.mubr.bf16.mxu0 0
      %645 = vmatmul.mubr.bf16.gmra.mrb[0].mxu0 %v483
      %v646 = vpop.f32.mrb[0].mxu0
      %v647 = vadd.f32 0.0, %v646
      %v648 = vpop.f32.mrb[0].mxu0
      %v649 = vpop.f32.mrb[0].mxu0
      %v650 = vadd.f32 0.0, %v649
      %v651 = vpop.f32.mrb[0].mxu0
      %652 = vmatprep.mubr.bf16.mxu0 0
      %653 = vmatmul.mubr.bf16.gmra.mrb[0].mxu0 %v486
      %v654 = vpop.f32.mrb[0].mxu0
      %v655 = vadd.f32 0.0, %v654
      %v656 = vpop.f32.mrb[0].mxu0
      %v657 = vpop.f32.mrb[0].mxu0
      %v658 = vadd.f32 0.0, %v657
      %v659 = vpop.f32.mrb[0].mxu0
      %660 = vmatprep.mubr.bf16.mxu0 0
      %661 = vmatmul.mubr.bf16.gmra.mrb[0].mxu0 %v489
      %v662 = vpop.f32.mrb[0].mxu0
      %v663 = vadd.f32 0.0, %v662
      %v664 = vpop.f32.mrb[0].mxu0
      %v665 = vpop.f32.mrb[0].mxu0
      %v666 = vadd.f32 0.0, %v665
      %v667 = vpop.f32.mrb[0].mxu0
      %668 = vmatprep.mubr.bf16.mxu0 0
      %669 = vmatmul.mubr.bf16.gmra.mrb[0].mxu0 %v492
      %v670 = vpop.f32.mrb[0].mxu0
      %v671 = vadd.f32 0.0, %v670
      %v672 = vpop.f32.mrb[0].mxu0
      %v673 = vpop.f32.mrb[0].mxu0
      %v674 = vadd.f32 0.0, %v673
      %v675 = vpop.f32.mrb[0].mxu0
      %676 = vmatprep.mubr.bf16.mxu0 0
      %677 = vmatmul.mubr.bf16.gmra.mrb[0].mxu0 %v495
      %v678 = vpop.f32.mrb[0].mxu0
      %v679 = vadd.f32 0.0, %v678
      %v680 = vpop.f32.mrb[0].mxu0
      %v681 = vpop.f32.mrb[0].mxu0
      %v682 = vadd.f32 0.0, %v681
      %v683 = vpop.f32.mrb[0].mxu0
      %684 = vmatprep.mubr.bf16.mxu0 0
      %685 = vmatmul.mubr.bf16.gmra.mrb[0].mxu0 %v498
      %v686 = vpop.f32.mrb[0].mxu0
      %v687 = vadd.f32 0.0, %v686
      %v688 = vpop.f32.mrb[0].mxu0
      %v689 = vpop.f32.mrb[0].mxu0
      %v690 = vadd.f32 0.0, %v689
      %v691 = vpop.f32.mrb[0].mxu0
      %692 = vmatprep.mubr.bf16.mxu0 0
      %693 = vmatmul.mubr.bf16.gmra.mrb[0].mxu0 %v501
      %v694 = vpop.f32.mrb[0].mxu0
      %v695 = vadd.f32 0.0, %v694
      %v696 = vpop.f32.mrb[0].mxu0
      %v697 = vpop.f32.mrb[0].mxu0
      %v698 = vadd.f32 0.0, %v697
      %v699 = vpop.f32.mrb[0].mxu0
      %700 = vmatprep.mubr.bf16.mxu0 0
      %701 = vmatmul.mubr.bf16.gmra.mrb[0].mxu0 %v504
      %v702 = vpop.f32.mrb[0].mxu0
      %v703 = vadd.f32 0.0, %v702
      %v704 = vpop.f32.mrb[0].mxu0
      %v705 = vpop.f32.mrb[0].mxu0
      %v706 = vadd.f32 0.0, %v705
      %v707 = vpop.f32.mrb[0].mxu0
      %708 = vmatprep.mubr.bf16.mxu0 0
      %709 = vmatmul.mubr.bf16.gmra.mrb[0].mxu0 %v507
      %v710 = vpop.f32.mrb[0].mxu0
      %v711 = vadd.f32 0.0, %v710
      %v712 = vpop.f32.mrb[0].mxu0
      %v713 = vpop.f32.mrb[0].mxu0
      %v714 = vadd.f32 0.0, %v713
      %v715 = vpop.f32.mrb[0].mxu0
      %716 = vmatprep.mubr.bf16.mxu0 0
      %717 = vmatmul.mubr.bf16.gmra.mrb[0].mxu0 %v510
      %v718 = vpop.f32.mrb[0].mxu0
      %v719 = vadd.f32 0.0, %v718
      %v720 = vpop.f32.mrb[0].mxu0
      %v721 = vpop.f32.mrb[0].mxu0
      %v722 = vadd.f32 0.0, %v721
      %v723 = vpop.f32.mrb[0].mxu0
      %724 = vmatprep.mubr.bf16.mxu0 0
      %725 = vmatmul.mubr.bf16.gmra.mrb[0].mxu0 %v513
      %v726 = vpop.f32.mrb[0].mxu0
      %v727 = vadd.f32 0.0, %v726
      %v728 = vpop.f32.mrb[0].mxu0
      %v729 = vpop.f32.mrb[0].mxu0
      %v730 = vadd.f32 0.0, %v729
      %v731 = vpop.f32.mrb[0].mxu0
      %732 = vmatprep.mubr.bf16.mxu0 0
      %733 = vmatmul.mubr.bf16.gmra.mrb[0].mxu0 %v516
      %v734 = vpop.f32.mrb[0].mxu0
      %v735 = vadd.f32 0.0, %v734
      %v736 = vpop.f32.mrb[0].mxu0
      %v737 = vpop.f32.mrb[0].mxu0
      %v738 = vadd.f32 0.0, %v737
      %v739 = vpop.f32.mrb[0].mxu0
      %740 = vmatprep.mubr.bf16.mxu0 0
      %741 = vmatmul.mubr.bf16.gmra.mrb[0].mxu0 %v519
      %v742 = vpop.f32.mrb[0].mxu0
      %v743 = vadd.f32 0.0, %v742
      %v744 = vpop.f32.mrb[0].mxu0
      %v745 = vpop.f32.mrb[0].mxu0
      %v746 = vadd.f32 0.0, %v745
      %v747 = vpop.f32.mrb[0].mxu0
      %748 = vmatprep.mubr.bf16.mxu0 0
      %749 = vmatmul.mubr.bf16.gmra.mrb[0].mxu0 %v522
      %v750 = vpop.f32.mrb[0].mxu0
      %v751 = vadd.f32 0.0, %v750
      %v752 = vpop.f32.mrb[0].mxu0
      %v753 = vpop.f32.mrb[0].mxu0
      %v754 = vadd.f32 0.0, %v753
      %v755 = vpop.f32.mrb[0].mxu0
      %756 = vmatprep.mubr.bf16.mxu0 0
      %757 = vmatmul.mubr.bf16.gmra.mrb[0].mxu0 %v525
      %v758 = vpop.f32.mrb[0].mxu0
      %v759 = vadd.f32 0.0, %v758
      %v760 = vpop.f32.mrb[0].mxu0
      %v761 = vpop.f32.mrb[0].mxu0
      %v762 = vadd.f32 0.0, %v761
      %v763 = vpop.f32.mrb[0].mxu0
      %764 = vmatprep.mubr.bf16.mxu0 0
      %765 = vmatmul.mubr.bf16.gmra.mrb[0].mxu0 %v528
      %v766 = vpop.f32.mrb[0].mxu0
      %v767 = vadd.f32 0.0, %v766
      %v768 = vpop.f32.mrb[0].mxu0
      %v769 = vpop.f32.mrb[0].mxu0
      %v770 = vadd.f32 0.0, %v769
      %v771 = vpop.f32.mrb[0].mxu0
      %772 = vmatprep.mubr.bf16.mxu0 0
      %773 = vmatmul.mubr.bf16.gmra.mrb[0].mxu0 %v531
      %v774 = vpop.f32.mrb[0].mxu0
      %v775 = vadd.f32 0.0, %v774
      %v776 = vpop.f32.mrb[0].mxu0
      %v777 = vpop.f32.mrb[0].mxu0
      %v778 = vadd.f32 0.0, %v777
      %v779 = vpop.f32.mrb[0].mxu0
      %780 = vmatprep.mubr.bf16.mxu0 0
      %781 = vmatmul.mubr.bf16.gmra.mrb[0].mxu0 %v534
      %v782 = vpop.f32.mrb[0].mxu0
      %v783 = vadd.f32 0.0, %v782
      %v784 = vpop.f32.mrb[0].mxu0
      %v785 = vpop.f32.mrb[0].mxu0
      %v786 = vadd.f32 0.0, %v785
      %v787 = vpop.f32.mrb[0].mxu0
      %788 = vmatprep.mubr.bf16.mxu0 0
      %789 = vmatmul.mubr.bf16.gmra.mrb[0].mxu0 %v537
      %v790 = vpop.f32.mrb[0].mxu0
      %v791 = vadd.f32 0.0, %v790
      %v792 = vpop.f32.mrb[0].mxu0
      %v793 = vpop.f32.mrb[0].mxu0
      %v794 = vadd.f32 0.0, %v793
      %v795 = vpop.f32.mrb[0].mxu0
      %796 = vmatprep.mubr.bf16.mxu0 0
      %797 = vmatmul.mubr.bf16.gmra.mrb[0].mxu0 %v540
      %v798 = vpop.f32.mrb[0].mxu0
      %v799 = vadd.f32 0.0, %v798
      %v800 = vpop.f32.mrb[0].mxu0
      %v801 = vpop.f32.mrb[0].mxu0
      %v802 = vadd.f32 0.0, %v801
      %v803 = vpop.f32.mrb[0].mxu0
      %804 = vmatprep.mubr.bf16.mxu0 0
      %805 = vmatmul.mubr.bf16.gmra.mrb[0].mxu0 %v543
      %v806 = vpop.f32.mrb[0].mxu0
      %v807 = vadd.f32 0.0, %v806
      %v808 = vpop.f32.mrb[0].mxu0
      %v809 = vpop.f32.mrb[0].mxu0
      %v810 = vadd.f32 0.0, %v809
      %v811 = vpop.f32.mrb[0].mxu0
      %812 = vmatprep.mubr.bf16.mxu0 0
      %813 = vmatmul.mubr.bf16.gmra.mrb[0].mxu0 %v546
      %v814 = vpop.f32.mrb[0].mxu0
      %v815 = vadd.f32 0.0, %v814
      %v816 = vpop.f32.mrb[0].mxu0
      %v817 = vpop.f32.mrb[0].mxu0
      %v818 = vadd.f32 0.0, %v817
      %v819 = vpop.f32.mrb[0].mxu0
      %820 = vmatprep.mubr.bf16.mxu0 0
      %821 = vmatmul.mubr.bf16.gmra.mrb[0].mxu0 %v549
      %v822 = vpop.f32.mrb[0].mxu0
      %v823 = vadd.f32 0.0, %v822
      %v824 = vpop.f32.mrb[0].mxu0
      %v825 = vpop.f32.mrb[0].mxu0
      %v826 = vadd.f32 0.0, %v825
      %v827 = vpop.f32.mrb[0].mxu0
      %828 = vmatprep.mubr.bf16.mxu0 0
      %829 = vmatmul.mubr.bf16.gmra.mrb[0].mxu0 %v552
      %v830 = vpop.f32.mrb[0].mxu0
      %v831 = vadd.f32 0.0, %v830
      %v832 = vpop.f32.mrb[0].mxu0
      %v833 = vpop.f32.mrb[0].mxu0
      %v834 = vadd.f32 0.0, %v833
      %v835 = vpop.f32.mrb[0].mxu0
      %836 = vmatprep.mubr.bf16.mxu0 0
      %837 = vmatmul.mubr.bf16.gmra.mrb[0].mxu0 %v555
      %v838 = vpop.f32.mrb[0].mxu0
      %v839 = vadd.f32 0.0, %v838
      %v840 = vpop.f32.mrb[0].mxu0
      %v841 = vpop.f32.mrb[0].mxu0
      %v842 = vadd.f32 0.0, %v841
      %v843 = vpop.f32.mrb[0].mxu0
      %844 = vmatprep.mubr.bf16.mxu0 0
      %845 = vmatmul.mubr.bf16.gmra.mrb[0].mxu0 %v558
      %v846 = vpop.f32.mrb[0].mxu0
      %v847 = vadd.f32 0.0, %v846
      %v848 = vpop.f32.mrb[0].mxu0
      %v849 = vpop.f32.mrb[0].mxu0
      %v850 = vadd.f32 0.0, %v849
      %v851 = vpop.f32.mrb[0].mxu0
      %852 = vdwg.mxu0
      %p853 = scmp.eq.s32.totalorder %s19, 0
      %p854 = scmp.eq.s32.totalorder %s20, 0
      %p855 = pnand %p853, %p854
      %p856 = pneg %p855
      // Predicated region
      $region37: #{tpu_custom_call.1} parent=35 // pred_check
        _
      $region38: #{tpu_custom_call.1} parent=35 // pred_check_branch
        %858 = sbr.rel (%p855) target = $region40
      $region39: #{tpu_custom_call.1} parent=35 // pred_region
        %vm859 = vcmask 64512
        %v860 = vsel %vm859, %v599, 0.0
        %v861 = vsel %vm859, %v602, 0.0
        %v862 = vadd.f32 %v860, %v861
        %v863 = vsel %vm859, %v607, 0.0
        %v864 = vadd.f32 %v862, %v863
        %v865 = vsel %vm859, %v610, 0.0
        %v866 = vadd.f32 %v864, %v865
        %v867 = vsel %vm859, %v615, 0.0
        %v868 = vadd.f32 %v866, %v867
        %v869 = vsel %vm859, %v618, 0.0
        %v870 = vadd.f32 %v868, %v869
        %v871 = vsel %vm859, %v623, 0.0
        %v872 = vadd.f32 %v870, %v871
        %v873 = vsel %vm859, %v626, 0.0
        %v874 = vadd.f32 %v872, %v873
        %v875 = vsel %vm859, %v631, 0.0
        %v876 = vadd.f32 %v874, %v875
        %v877 = vsel %vm859, %v634, 0.0
        %v878 = vadd.f32 %v876, %v877
        %v879 = vsel %vm859, %v639, 0.0
        %v880 = vadd.f32 %v878, %v879
        %v881 = vsel %vm859, %v642, 0.0
        %v882 = vadd.f32 %v880, %v881
        %v883 = vsel %vm859, %v647, 0.0
        %v884 = vadd.f32 %v882, %v883
        %v885 = vsel %vm859, %v650, 0.0
        %v886 = vadd.f32 %v884, %v885
        %v887 = vsel %vm859, %v655, 0.0
        %v888 = vadd.f32 %v886, %v887
        %v889 = vsel %vm859, %v658, 0.0
        %v890 = vadd.f32 %v888, %v889
        %v891 = vsel %vm859, %v663, 0.0
        %v892 = vadd.f32 %v890, %v891
        %v893 = vsel %vm859, %v666, 0.0
        %v894 = vadd.f32 %v892, %v893
        %v895 = vsel %vm859, %v671, 0.0
        %v896 = vadd.f32 %v894, %v895
        %v897 = vsel %vm859, %v674, 0.0
        %v898 = vadd.f32 %v896, %v897
        %v899 = vsel %vm859, %v679, 0.0
        %v900 = vadd.f32 %v898, %v899
        %v901 = vsel %vm859, %v682, 0.0
        %v902 = vadd.f32 %v900, %v901
        %v903 = vsel %vm859, %v687, 0.0
        %v904 = vadd.f32 %v902, %v903
        %v905 = vsel %vm859, %v690, 0.0
        %v906 = vadd.f32 %v904, %v905
        %v907 = vsel %vm859, %v695, 0.0
        %v908 = vadd.f32 %v906, %v907
        %v909 = vsel %vm859, %v698, 0.0
        %v910 = vadd.f32 %v908, %v909
        %v911 = vsel %vm859, %v703, 0.0
        %v912 = vadd.f32 %v910, %v911
        %v913 = vsel %vm859, %v706, 0.0
        %v914 = vadd.f32 %v912, %v913
        %v915 = vsel %vm859, %v711, 0.0
        %v916 = vadd.f32 %v914, %v915
        %v917 = vsel %vm859, %v714, 0.0
        %v918 = vadd.f32 %v916, %v917
        %v919 = vsel %vm859, %v719, 0.0
        %v920 = vadd.f32 %v918, %v919
        %v921 = vsel %vm859, %v722, 0.0
        %v922 = vadd.f32 %v920, %v921
        %v923 = vsel %vm859, %v727, 0.0
        %v924 = vadd.f32 %v922, %v923
        %v925 = vsel %vm859, %v730, 0.0
        %v926 = vadd.f32 %v924, %v925
        %v927 = vsel %vm859, %v735, 0.0
        %v928 = vadd.f32 %v926, %v927
        %v929 = vsel %vm859, %v738, 0.0
        %v930 = vadd.f32 %v928, %v929
        %v931 = vsel %vm859, %v743, 0.0
        %v932 = vadd.f32 %v930, %v931
        %v933 = vsel %vm859, %v746, 0.0
        %v934 = vadd.f32 %v932, %v933
        %v935 = vsel %vm859, %v751, 0.0
        %v936 = vadd.f32 %v934, %v935
        %v937 = vsel %vm859, %v754, 0.0
        %v938 = vadd.f32 %v936, %v937
        %v939 = vsel %vm859, %v759, 0.0
        %v940 = vadd.f32 %v938, %v939
        %v941 = vsel %vm859, %v762, 0.0
        %v942 = vadd.f32 %v940, %v941
        %v943 = vsel %vm859, %v767, 0.0
        %v944 = vadd.f32 %v942, %v943
        %v945 = vsel %vm859, %v770, 0.0
        %v946 = vadd.f32 %v944, %v945
        %v947 = vsel %vm859, %v775, 0.0
        %v948 = vadd.f32 %v946, %v947
        %v949 = vsel %vm859, %v778, 0.0
        %v950 = vadd.f32 %v948, %v949
        %v951 = vsel %vm859, %v783, 0.0
        %v952 = vadd.f32 %v950, %v951
        %v953 = vsel %vm859, %v786, 0.0
        %v954 = vadd.f32 %v952, %v953
        %v955 = vsel %vm859, %v791, 0.0
        %v956 = vadd.f32 %v954, %v955
        %v957 = vsel %vm859, %v794, 0.0
        %v958 = vadd.f32 %v956, %v957
        %v959 = vsel %vm859, %v799, 0.0
        %v960 = vadd.f32 %v958, %v959
        %v961 = vsel %vm859, %v802, 0.0
        %v962 = vadd.f32 %v960, %v961
        %v963 = vsel %vm859, %v807, 0.0
        %v964 = vadd.f32 %v962, %v963
        %v965 = vsel %vm859, %v810, 0.0
        %v966 = vadd.f32 %v964, %v965
        %v967 = vsel %vm859, %v815, 0.0
        %v968 = vadd.f32 %v966, %v967
        %v969 = vsel %vm859, %v818, 0.0
        %v970 = vadd.f32 %v968, %v969
        %v971 = vsel %vm859, %v823, 0.0
        %v972 = vadd.f32 %v970, %v971
        %v973 = vsel %vm859, %v826, 0.0
        %v974 = vadd.f32 %v972, %v973
        %v975 = vsel %vm859, %v831, 0.0
        %v976 = vadd.f32 %v974, %v975
        %v977 = vsel %vm859, %v834, 0.0
        %v978 = vadd.f32 %v976, %v977
        %v979 = vsel %vm859, %v839, 0.0
        %v980 = vadd.f32 %v978, %v979
        %v981 = vsel %vm859, %v842, 0.0
        %v982 = vadd.f32 %v980, %v981
        %v983 = vsel %vm859, %v847, 0.0
        %v984 = vadd.f32 %v982, %v983
        %v985 = vsel %vm859, %v850, 0.0
        %v986 = vadd.f32 %v984, %v985
        %v987 = vrot.slane %v986, 4
        %v988 = vadd.f32 %v986, %v987
        %v989 = vrot.slane %v988, 2
        %v990 = vadd.f32 %v988, %v989
        %v991 = vrot.slane %v990, 1
        %v992 = vadd.f32 %v990, %v991
        %v993 = vrcp.pop 512.0
        %v994 = vmul.f32 %v992, %v993
        %vm995 = vcmask 57344
        %996 = vst.msk [vmem:[#allocation4] sm:$0x1] %vm995, %v994
        %997 = vst.msk [vmem:[#allocation2] sm:$0x1] %vm995, 0.0
        %998 = vst.msk [vmem:[#allocation3] sm:$0x1] %vm995, 0.0
      $region40: #{tpu_custom_call.1} parent=35 // pred_fallthru
        _
      // Predicated region
      $region41: #{tpu_custom_call.1} parent=35 // pred_check
        %p999 = pneg %p853
      $region42: #{tpu_custom_call.1} parent=35 // pred_check_branch
        %1001 = sbr.rel (%p999) target = $region44
      $region43: #{tpu_custom_call.1} parent=35 // pred_region
        %v1002 = vlaneseq
        %v1003 = vshrl.u32 %v1002, 7
        %v1004 = vadd.s32 %v1003, 8
        %v1005 = vadd.s32 %v1003, 16
        %v1006 = vadd.s32 %v1003, 24
        %v1007 = vadd.s32 %v1003, 32
        %v1008 = vadd.s32 %v1003, 40
        %v1009 = vadd.s32 %v1003, 48
        %v1010 = vadd.s32 %v1003, 56
        %v1011 = vadd.s32 %v1003, 64
        %v1012 = vadd.s32 %v1003, 72
        %v1013 = vadd.s32 %v1003, 80
        %v1014 = vadd.s32 %v1003, 88
        %v1015 = vadd.s32 %v1003, 96
        %v1016 = vadd.s32 %v1003, 104
        %v1017 = vadd.s32 %v1003, 112
        %v1018 = vadd.s32 %v1003, 120
        %v1019 = vadd.s32 %v1003, 128
        %v1020 = vadd.s32 %v1003, 136
        %v1021 = vadd.s32 %v1003, 144
        %v1022 = vadd.s32 %v1003, 152
        %v1023 = vadd.s32 %v1003, 160
        %v1024 = vadd.s32 %v1003, 168
        %v1025 = vadd.s32 %v1003, 176
        %v1026 = vadd.s32 %v1003, 184
        %v1027 = vadd.s32 %v1003, 192
        %v1028 = vadd.s32 %v1003, 200
        %v1029 = vadd.s32 %v1003, 208
        %v1030 = vadd.s32 %v1003, 216
        %v1031 = vadd.s32 %v1003, 224
        %v1032 = vadd.s32 %v1003, 232
        %v1033 = vadd.s32 %v1003, 240
        %v1034 = vadd.s32 %v1003, 248
        %v1035 = vadd.s32 %v1003, 256
        %v1036 = vadd.s32 %v1003, 264
        %v1037 = vadd.s32 %v1003, 272
        %v1038 = vadd.s32 %v1003, 280
        %v1039 = vadd.s32 %v1003, 288
        %v1040 = vadd.s32 %v1003, 296
        %v1041 = vadd.s32 %v1003, 304
        %v1042 = vadd.s32 %v1003, 312
        %v1043 = vadd.s32 %v1003, 320
        %v1044 = vadd.s32 %v1003, 328
        %v1045 = vadd.s32 %v1003, 336
        %v1046 = vadd.s32 %v1003, 344
        %v1047 = vadd.s32 %v1003, 352
        %v1048 = vadd.s32 %v1003, 360
        %v1049 = vadd.s32 %v1003, 368
        %v1050 = vadd.s32 %v1003, 376
        %v1051 = vadd.s32 %v1003, 384
        %v1052 = vadd.s32 %v1003, 392
        %v1053 = vadd.s32 %v1003, 400
        %v1054 = vadd.s32 %v1003, 408
        %v1055 = vadd.s32 %v1003, 416
        %v1056 = vadd.s32 %v1003, 424
        %v1057 = vadd.s32 %v1003, 432
        %v1058 = vadd.s32 %v1003, 440
        %v1059 = vadd.s32 %v1003, 448
        %v1060 = vadd.s32 %v1003, 456
        %v1061 = vadd.s32 %v1003, 464
        %v1062 = vadd.s32 %v1003, 472
        %v1063 = vadd.s32 %v1003, 480
        %v1064 = vadd.s32 %v1003, 488
        %v1065 = vadd.s32 %v1003, 496
        %v1066 = vadd.s32 %v1003, 504
        %s1067 = smul.u32 %s20, 512
        %v1068 = vstv %s1067
        %v1069 = vadd.s32 %v1003, %v1068
        %v1070 = vadd.s32 %v1004, %v1068
        %v1071 = vadd.s32 %v1005, %v1068
        %v1072 = vadd.s32 %v1006, %v1068
        %v1073 = vadd.s32 %v1007, %v1068
        %v1074 = vadd.s32 %v1008, %v1068
        %v1075 = vadd.s32 %v1009, %v1068
        %v1076 = vadd.s32 %v1010, %v1068
        %v1077 = vadd.s32 %v1011, %v1068
        %v1078 = vadd.s32 %v1012, %v1068
        %v1079 = vadd.s32 %v1013, %v1068
        %v1080 = vadd.s32 %v1014, %v1068
        %v1081 = vadd.s32 %v1015, %v1068
        %v1082 = vadd.s32 %v1016, %v1068
        %v1083 = vadd.s32 %v1017, %v1068
        %v1084 = vadd.s32 %v1018, %v1068
        %v1085 = vadd.s32 %v1019, %v1068
        %v1086 = vadd.s32 %v1020, %v1068
        %v1087 = vadd.s32 %v1021, %v1068
        %v1088 = vadd.s32 %v1022, %v1068
        %v1089 = vadd.s32 %v1023, %v1068
        %v1090 = vadd.s32 %v1024, %v1068
        %v1091 = vadd.s32 %v1025, %v1068
        %v1092 = vadd.s32 %v1026, %v1068
        %v1093 = vadd.s32 %v1027, %v1068
        %v1094 = vadd.s32 %v1028, %v1068
        %v1095 = vadd.s32 %v1029, %v1068
        %v1096 = vadd.s32 %v1030, %v1068
        %v1097 = vadd.s32 %v1031, %v1068
        %v1098 = vadd.s32 %v1032, %v1068
        %v1099 = vadd.s32 %v1033, %v1068
        %v1100 = vadd.s32 %v1034, %v1068
        %v1101 = vadd.s32 %v1035, %v1068
        %v1102 = vadd.s32 %v1036, %v1068
        %v1103 = vadd.s32 %v1037, %v1068
        %v1104 = vadd.s32 %v1038, %v1068
        %v1105 = vadd.s32 %v1039, %v1068
        %v1106 = vadd.s32 %v1040, %v1068
        %v1107 = vadd.s32 %v1041, %v1068
        %v1108 = vadd.s32 %v1042, %v1068
        %v1109 = vadd.s32 %v1043, %v1068
        %v1110 = vadd.s32 %v1044, %v1068
        %v1111 = vadd.s32 %v1045, %v1068
        %v1112 = vadd.s32 %v1046, %v1068
        %v1113 = vadd.s32 %v1047, %v1068
        %v1114 = vadd.s32 %v1048, %v1068
        %v1115 = vadd.s32 %v1049, %v1068
        %v1116 = vadd.s32 %v1050, %v1068
        %v1117 = vadd.s32 %v1051, %v1068
        %v1118 = vadd.s32 %v1052, %v1068
        %v1119 = vadd.s32 %v1053, %v1068
        %v1120 = vadd.s32 %v1054, %v1068
        %v1121 = vadd.s32 %v1055, %v1068
        %v1122 = vadd.s32 %v1056, %v1068
        %v1123 = vadd.s32 %v1057, %v1068
        %v1124 = vadd.s32 %v1058, %v1068
        %v1125 = vadd.s32 %v1059, %v1068
        %v1126 = vadd.s32 %v1060, %v1068
        %v1127 = vadd.s32 %v1061, %v1068
        %v1128 = vadd.s32 %v1062, %v1068
        %v1129 = vadd.s32 %v1063, %v1068
        %v1130 = vadd.s32 %v1064, %v1068
        %v1131 = vadd.s32 %v1065, %v1068
        %v1132 = vadd.s32 %v1066, %v1068
        %vm1133 = vcmp.lt.s32.totalorder %v1069, 512
        %vm1134 = vcmp.lt.s32.totalorder %v1070, 512
        %vm1135 = vcmp.lt.s32.totalorder %v1071, 512
        %vm1136 = vcmp.lt.s32.totalorder %v1072, 512
        %vm1137 = vcmp.lt.s32.totalorder %v1073, 512
        %vm1138 = vcmp.lt.s32.totalorder %v1074, 512
        %vm1139 = vcmp.lt.s32.totalorder %v1075, 512
        %vm1140 = vcmp.lt.s32.totalorder %v1076, 512
        %vm1141 = vcmp.lt.s32.totalorder %v1077, 512
        %vm1142 = vcmp.lt.s32.totalorder %v1078, 512
        %vm1143 = vcmp.lt.s32.totalorder %v1079, 512
        %vm1144 = vcmp.lt.s32.totalorder %v1080, 512
        %vm1145 = vcmp.lt.s32.totalorder %v1081, 512
        %vm1146 = vcmp.lt.s32.totalorder %v1082, 512
        %vm1147 = vcmp.lt.s32.totalorder %v1083, 512
        %vm1148 = vcmp.lt.s32.totalorder %v1084, 512
        %vm1149 = vcmp.lt.s32.totalorder %v1085, 512
        %vm1150 = vcmp.lt.s32.totalorder %v1086, 512
        %vm1151 = vcmp.lt.s32.totalorder %v1087, 512
        %vm1152 = vcmp.lt.s32.totalorder %v1088, 512
        %vm1153 = vcmp.lt.s32.totalorder %v1089, 512
        %vm1154 = vcmp.lt.s32.totalorder %v1090, 512
        %vm1155 = vcmp.lt.s32.totalorder %v1091, 512
        %vm1156 = vcmp.lt.s32.totalorder %v1092, 512
        %vm1157 = vcmp.lt.s32.totalorder %v1093, 512
        %vm1158 = vcmp.lt.s32.totalorder %v1094, 512
        %vm1159 = vcmp.lt.s32.totalorder %v1095, 512
        %vm1160 = vcmp.lt.s32.totalorder %v1096, 512
        %vm1161 = vcmp.lt.s32.totalorder %v1097, 512
        %vm1162 = vcmp.lt.s32.totalorder %v1098, 512
        %vm1163 = vcmp.lt.s32.totalorder %v1099, 512
        %vm1164 = vcmp.lt.s32.totalorder %v1100, 512
        %vm1165 = vcmp.lt.s32.totalorder %v1101, 512
        %vm1166 = vcmp.lt.s32.totalorder %v1102, 512
        %vm1167 = vcmp.lt.s32.totalorder %v1103, 512
        %vm1168 = vcmp.lt.s32.totalorder %v1104, 512
        %vm1169 = vcmp.lt.s32.totalorder %v1105, 512
        %vm1170 = vcmp.lt.s32.totalorder %v1106, 512
        %vm1171 = vcmp.lt.s32.totalorder %v1107, 512
        %vm1172 = vcmp.lt.s32.totalorder %v1108, 512
        %vm1173 = vcmp.lt.s32.totalorder %v1109, 512
        %vm1174 = vcmp.lt.s32.totalorder %v1110, 512
        %vm1175 = vcmp.lt.s32.totalorder %v1111, 512
        %vm1176 = vcmp.lt.s32.totalorder %v1112, 512
        %vm1177 = vcmp.lt.s32.totalorder %v1113, 512
        %vm1178 = vcmp.lt.s32.totalorder %v1114, 512
        %vm1179 = vcmp.lt.s32.totalorder %v1115, 512
        %vm1180 = vcmp.lt.s32.totalorder %v1116, 512
        %vm1181 = vcmp.lt.s32.totalorder %v1117, 512
        %vm1182 = vcmp.lt.s32.totalorder %v1118, 512
        %vm1183 = vcmp.lt.s32.totalorder %v1119, 512
        %vm1184 = vcmp.lt.s32.totalorder %v1120, 512
        %vm1185 = vcmp.lt.s32.totalorder %v1121, 512
        %vm1186 = vcmp.lt.s32.totalorder %v1122, 512
        %vm1187 = vcmp.lt.s32.totalorder %v1123, 512
        %vm1188 = vcmp.lt.s32.totalorder %v1124, 512
        %vm1189 = vcmp.lt.s32.totalorder %v1125, 512
        %vm1190 = vcmp.lt.s32.totalorder %v1126, 512
        %vm1191 = vcmp.lt.s32.totalorder %v1127, 512
        %vm1192 = vcmp.lt.s32.totalorder %v1128, 512
        %vm1193 = vcmp.lt.s32.totalorder %v1129, 512
        %vm1194 = vcmp.lt.s32.totalorder %v1130, 512
        %vm1195 = vcmp.lt.s32.totalorder %v1131, 512
        %vm1196 = vcmp.lt.s32.totalorder %v1132, 512
        %v1197 = vld [vmem:[#allocation4] sm:$0x1]
        %v1199 = vlaneseq
        %v1200 = vshrl.u32 %v1199, 7
        %v1201 = vsub.s32 0, %v1200
        %v1202 = vrot.slane %v1197, %v1201
        %v1204 = vsub.f32 %v599, %v1202
        %v1205 = vsub.f32 %v602, %v1202
        %v1206 = vsub.f32 %v607, %v1202
        %v1207 = vsub.f32 %v610, %v1202
        %v1208 = vsub.f32 %v615, %v1202
        %v1209 = vsub.f32 %v618, %v1202
        %v1210 = vsub.f32 %v623, %v1202
        %v1211 = vsub.f32 %v626, %v1202
        %v1212 = vsub.f32 %v631, %v1202
        %v1213 = vsub.f32 %v634, %v1202
        %v1214 = vsub.f32 %v639, %v1202
        %v1215 = vsub.f32 %v642, %v1202
        %v1216 = vsub.f32 %v647, %v1202
        %v1217 = vsub.f32 %v650, %v1202
        %v1218 = vsub.f32 %v655, %v1202
        %v1219 = vsub.f32 %v658, %v1202
        %v1220 = vsub.f32 %v663, %v1202
        %v1221 = vsub.f32 %v666, %v1202
        %v1222 = vsub.f32 %v671, %v1202
        %v1223 = vsub.f32 %v674, %v1202
        %v1224 = vsub.f32 %v679, %v1202
        %v1225 = vsub.f32 %v682, %v1202
        %v1226 = vsub.f32 %v687, %v1202
        %v1227 = vsub.f32 %v690, %v1202
        %v1228 = vsub.f32 %v695, %v1202
        %v1229 = vsub.f32 %v698, %v1202
        %v1230 = vsub.f32 %v703, %v1202
        %v1231 = vsub.f32 %v706, %v1202
        %v1232 = vsub.f32 %v711, %v1202
        %v1233 = vsub.f32 %v714, %v1202
        %v1234 = vsub.f32 %v719, %v1202
        %v1235 = vsub.f32 %v722, %v1202
        %v1236 = vsub.f32 %v727, %v1202
        %v1237 = vsub.f32 %v730, %v1202
        %v1238 = vsub.f32 %v735, %v1202
        %v1239 = vsub.f32 %v738, %v1202
        %v1240 = vsub.f32 %v743, %v1202
        %v1241 = vsub.f32 %v746, %v1202
        %v1242 = vsub.f32 %v751, %v1202
        %v1243 = vsub.f32 %v754, %v1202
        %v1244 = vsub.f32 %v759, %v1202
        %v1245 = vsub.f32 %v762, %v1202
        %v1246 = vsub.f32 %v767, %v1202
        %v1247 = vsub.f32 %v770, %v1202
        %v1248 = vsub.f32 %v775, %v1202
        %v1249 = vsub.f32 %v778, %v1202
        %v1250 = vsub.f32 %v783, %v1202
        %v1251 = vsub.f32 %v786, %v1202
        %v1252 = vsub.f32 %v791, %v1202
        %v1253 = vsub.f32 %v794, %v1202
        %v1254 = vsub.f32 %v799, %v1202
        %v1255 = vsub.f32 %v802, %v1202
        %v1256 = vsub.f32 %v807, %v1202
        %v1257 = vsub.f32 %v810, %v1202
        %v1258 = vsub.f32 %v815, %v1202
        %v1259 = vsub.f32 %v818, %v1202
        %v1260 = vsub.f32 %v823, %v1202
        %v1261 = vsub.f32 %v826, %v1202
        %v1262 = vsub.f32 %v831, %v1202
        %v1263 = vsub.f32 %v834, %v1202
        %v1264 = vsub.f32 %v839, %v1202
        %v1265 = vsub.f32 %v842, %v1202
        %v1266 = vsub.f32 %v847, %v1202
        %v1267 = vsub.f32 %v850, %v1202
        %v1268 = vsel %vm1133, 1, 0
        %v1269 = vsel %vm1134, 1, 0
        %v1270 = vsel %vm1135, 1, 0
        %v1271 = vsel %vm1136, 1, 0
        %v1272 = vsel %vm1137, 1, 0
        %v1273 = vsel %vm1138, 1, 0
        %v1274 = vsel %vm1139, 1, 0
        %v1275 = vsel %vm1140, 1, 0
        %v1276 = vsel %vm1141, 1, 0
        %v1277 = vsel %vm1142, 1, 0
        %v1278 = vsel %vm1143, 1, 0
        %v1279 = vsel %vm1144, 1, 0
        %v1280 = vsel %vm1145, 1, 0
        %v1281 = vsel %vm1146, 1, 0
        %v1282 = vsel %vm1147, 1, 0
        %v1283 = vsel %vm1148, 1, 0
        %v1284 = vsel %vm1149, 1, 0
        %v1285 = vsel %vm1150, 1, 0
        %v1286 = vsel %vm1151, 1, 0
        %v1287 = vsel %vm1152, 1, 0
        %v1288 = vsel %vm1153, 1, 0
        %v1289 = vsel %vm1154, 1, 0
        %v1290 = vsel %vm1155, 1, 0
        %v1291 = vsel %vm1156, 1, 0
        %v1292 = vsel %vm1157, 1, 0
        %v1293 = vsel %vm1158, 1, 0
        %v1294 = vsel %vm1159, 1, 0
        %v1295 = vsel %vm1160, 1, 0
        %v1296 = vsel %vm1161, 1, 0
        %v1297 = vsel %vm1162, 1, 0
        %v1298 = vsel %vm1163, 1, 0
        %v1299 = vsel %vm1164, 1, 0
        %v1300 = vsel %vm1165, 1, 0
        %v1301 = vsel %vm1166, 1, 0
        %v1302 = vsel %vm1167, 1, 0
        %v1303 = vsel %vm1168, 1, 0
        %v1304 = vsel %vm1169, 1, 0
        %v1305 = vsel %vm1170, 1, 0
        %v1306 = vsel %vm1171, 1, 0
        %v1307 = vsel %vm1172, 1, 0
        %v1308 = vsel %vm1173, 1, 0
        %v1309 = vsel %vm1174, 1, 0
        %v1310 = vsel %vm1175, 1, 0
        %v1311 = vsel %vm1176, 1, 0
        %v1312 = vsel %vm1177, 1, 0
        %v1313 = vsel %vm1178, 1, 0
        %v1314 = vsel %vm1179, 1, 0
        %v1315 = vsel %vm1180, 1, 0
        %v1316 = vsel %vm1181, 1, 0
        %v1317 = vsel %vm1182, 1, 0
        %v1318 = vsel %vm1183, 1, 0
        %v1319 = vsel %vm1184, 1, 0
        %v1320 = vsel %vm1185, 1, 0
        %v1321 = vsel %vm1186, 1, 0
        %v1322 = vsel %vm1187, 1, 0
        %v1323 = vsel %vm1188, 1, 0
        %v1324 = vsel %vm1189, 1, 0
        %v1325 = vsel %vm1190, 1, 0
        %v1326 = vsel %vm1191, 1, 0
        %v1327 = vsel %vm1192, 1, 0
        %v1328 = vsel %vm1193, 1, 0
        %v1329 = vsel %vm1194, 1, 0
        %v1330 = vsel %vm1195, 1, 0
        %v1331 = vsel %vm1196, 1, 0
        %vm1332 = vcmp.eq.s32.totalorder %v1268, 1
        %vm1333 = vcmp.eq.s32.totalorder %v1269, 1
        %vm1334 = vcmp.eq.s32.totalorder %v1270, 1
        %vm1335 = vcmp.eq.s32.totalorder %v1271, 1
        %vm1336 = vcmp.eq.s32.totalorder %v1272, 1
        %vm1337 = vcmp.eq.s32.totalorder %v1273, 1
        %vm1338 = vcmp.eq.s32.totalorder %v1274, 1
        %vm1339 = vcmp.eq.s32.totalorder %v1275, 1
        %vm1340 = vcmp.eq.s32.totalorder %v1276, 1
        %vm1341 = vcmp.eq.s32.totalorder %v1277, 1
        %vm1342 = vcmp.eq.s32.totalorder %v1278, 1
        %vm1343 = vcmp.eq.s32.totalorder %v1279, 1
        %vm1344 = vcmp.eq.s32.totalorder %v1280, 1
        %vm1345 = vcmp.eq.s32.totalorder %v1281, 1
        %vm1346 = vcmp.eq.s32.totalorder %v1282, 1
        %vm1347 = vcmp.eq.s32.totalorder %v1283, 1
        %vm1348 = vcmp.eq.s32.totalorder %v1284, 1
        %vm1349 = vcmp.eq.s32.totalorder %v1285, 1
        %vm1350 = vcmp.eq.s32.totalorder %v1286, 1
        %vm1351 = vcmp.eq.s32.totalorder %v1287, 1
        %vm1352 = vcmp.eq.s32.totalorder %v1288, 1
        %vm1353 = vcmp.eq.s32.totalorder %v1289, 1
        %vm1354 = vcmp.eq.s32.totalorder %v1290, 1
        %vm1355 = vcmp.eq.s32.totalorder %v1291, 1
        %vm1356 = vcmp.eq.s32.totalorder %v1292, 1
        %vm1357 = vcmp.eq.s32.totalorder %v1293, 1
        %vm1358 = vcmp.eq.s32.totalorder %v1294, 1
        %vm1359 = vcmp.eq.s32.totalorder %v1295, 1
        %vm1360 = vcmp.eq.s32.totalorder %v1296, 1
        %vm1361 = vcmp.eq.s32.totalorder %v1297, 1
        %vm1362 = vcmp.eq.s32.totalorder %v1298, 1
        %vm1363 = vcmp.eq.s32.totalorder %v1299, 1
        %vm1364 = vcmp.eq.s32.totalorder %v1300, 1
        %vm1365 = vcmp.eq.s32.totalorder %v1301, 1
        %vm1366 = vcmp.eq.s32.totalorder %v1302, 1
        %vm1367 = vcmp.eq.s32.totalorder %v1303, 1
        %vm1368 = vcmp.eq.s32.totalorder %v1304, 1
        %vm1369 = vcmp.eq.s32.totalorder %v1305, 1
        %vm1370 = vcmp.eq.s32.totalorder %v1306, 1
        %vm1371 = vcmp.eq.s32.totalorder %v1307, 1
        %vm1372 = vcmp.eq.s32.totalorder %v1308, 1
        %vm1373 = vcmp.eq.s32.totalorder %v1309, 1
        %vm1374 = vcmp.eq.s32.totalorder %v1310, 1
        %vm1375 = vcmp.eq.s32.totalorder %v1311, 1
        %vm1376 = vcmp.eq.s32.totalorder %v1312, 1
        %vm1377 = vcmp.eq.s32.totalorder %v1313, 1
        %vm1378 = vcmp.eq.s32.totalorder %v1314, 1
        %vm1379 = vcmp.eq.s32.totalorder %v1315, 1
        %vm1380 = vcmp.eq.s32.totalorder %v1316, 1
        %vm1381 = vcmp.eq.s32.totalorder %v1317, 1
        %vm1382 = vcmp.eq.s32.totalorder %v1318, 1
        %vm1383 = vcmp.eq.s32.totalorder %v1319, 1
        %vm1384 = vcmp.eq.s32.totalorder %v1320, 1
        %vm1385 = vcmp.eq.s32.totalorder %v1321, 1
        %vm1386 = vcmp.eq.s32.totalorder %v1322, 1
        %vm1387 = vcmp.eq.s32.totalorder %v1323, 1
        %vm1388 = vcmp.eq.s32.totalorder %v1324, 1
        %vm1389 = vcmp.eq.s32.totalorder %v1325, 1
        %vm1390 = vcmp.eq.s32.totalorder %v1326, 1
        %vm1391 = vcmp.eq.s32.totalorder %v1327, 1
        %vm1392 = vcmp.eq.s32.totalorder %v1328, 1
        %vm1393 = vcmp.eq.s32.totalorder %v1329, 1
        %vm1394 = vcmp.eq.s32.totalorder %v1330, 1
        %vm1395 = vcmp.eq.s32.totalorder %v1331, 1
        %v1396 = vsel %vm1332, %v1204, 0.0
        %v1397 = vsel %vm1333, %v1205, 0.0
        %v1398 = vsel %vm1334, %v1206, 0.0
        %v1399 = vsel %vm1335, %v1207, 0.0
        %v1400 = vsel %vm1336, %v1208, 0.0
        %v1401 = vsel %vm1337, %v1209, 0.0
        %v1402 = vsel %vm1338, %v1210, 0.0
        %v1403 = vsel %vm1339, %v1211, 0.0
        %v1404 = vsel %vm1340, %v1212, 0.0
        %v1405 = vsel %vm1341, %v1213, 0.0
        %v1406 = vsel %vm1342, %v1214, 0.0
        %v1407 = vsel %vm1343, %v1215, 0.0
        %v1408 = vsel %vm1344, %v1216, 0.0
        %v1409 = vsel %vm1345, %v1217, 0.0
        %v1410 = vsel %vm1346, %v1218, 0.0
        %v1411 = vsel %vm1347, %v1219, 0.0
        %v1412 = vsel %vm1348, %v1220, 0.0
        %v1413 = vsel %vm1349, %v1221, 0.0
        %v1414 = vsel %vm1350, %v1222, 0.0
        %v1415 = vsel %vm1351, %v1223, 0.0
        %v1416 = vsel %vm1352, %v1224, 0.0
        %v1417 = vsel %vm1353, %v1225, 0.0
        %v1418 = vsel %vm1354, %v1226, 0.0
        %v1419 = vsel %vm1355, %v1227, 0.0
        %v1420 = vsel %vm1356, %v1228, 0.0
        %v1421 = vsel %vm1357, %v1229, 0.0
        %v1422 = vsel %vm1358, %v1230, 0.0
        %v1423 = vsel %vm1359, %v1231, 0.0
        %v1424 = vsel %vm1360, %v1232, 0.0
        %v1425 = vsel %vm1361, %v1233, 0.0
        %v1426 = vsel %vm1362, %v1234, 0.0
        %v1427 = vsel %vm1363, %v1235, 0.0
        %v1428 = vsel %vm1364, %v1236, 0.0
        %v1429 = vsel %vm1365, %v1237, 0.0
        %v1430 = vsel %vm1366, %v1238, 0.0
        %v1431 = vsel %vm1367, %v1239, 0.0
        %v1432 = vsel %vm1368, %v1240, 0.0
        %v1433 = vsel %vm1369, %v1241, 0.0
        %v1434 = vsel %vm1370, %v1242, 0.0
        %v1435 = vsel %vm1371, %v1243, 0.0
        %v1436 = vsel %vm1372, %v1244, 0.0
        %v1437 = vsel %vm1373, %v1245, 0.0
        %v1438 = vsel %vm1374, %v1246, 0.0
        %v1439 = vsel %vm1375, %v1247, 0.0
        %v1440 = vsel %vm1376, %v1248, 0.0
        %v1441 = vsel %vm1377, %v1249, 0.0
        %v1442 = vsel %vm1378, %v1250, 0.0
        %v1443 = vsel %vm1379, %v1251, 0.0
        %v1444 = vsel %vm1380, %v1252, 0.0
        %v1445 = vsel %vm1381, %v1253, 0.0
        %v1446 = vsel %vm1382, %v1254, 0.0
        %v1447 = vsel %vm1383, %v1255, 0.0
        %v1448 = vsel %vm1384, %v1256, 0.0
        %v1449 = vsel %vm1385, %v1257, 0.0
        %v1450 = vsel %vm1386, %v1258, 0.0
        %v1451 = vsel %vm1387, %v1259, 0.0
        %v1452 = vsel %vm1388, %v1260, 0.0
        %v1453 = vsel %vm1389, %v1261, 0.0
        %v1454 = vsel %vm1390, %v1262, 0.0
        %v1455 = vsel %vm1391, %v1263, 0.0
        %v1456 = vsel %vm1392, %v1264, 0.0
        %v1457 = vsel %vm1393, %v1265, 0.0
        %v1458 = vsel %vm1394, %v1266, 0.0
        %v1459 = vsel %vm1395, %v1267, 0.0
        %v1460 = vld [vmem:[#allocation2] sm:$0x1]
        %vm1461 = vcmask 64512
        %v1462 = vsel %vm1461, %v1396, 0.0
        %v1463 = vsel %vm1461, %v1397, 0.0
        %v1464 = vadd.f32 %v1462, %v1463
        %v1465 = vsel %vm1461, %v1398, 0.0
        %v1466 = vadd.f32 %v1464, %v1465
        %v1467 = vsel %vm1461, %v1399, 0.0
        %v1468 = vadd.f32 %v1466, %v1467
        %v1469 = vsel %vm1461, %v1400, 0.0
        %v1470 = vadd.f32 %v1468, %v1469
        %v1471 = vsel %vm1461, %v1401, 0.0
        %v1472 = vadd.f32 %v1470, %v1471
        %v1473 = vsel %vm1461, %v1402, 0.0
        %v1474 = vadd.f32 %v1472, %v1473
        %v1475 = vsel %vm1461, %v1403, 0.0
        %v1476 = vadd.f32 %v1474, %v1475
        %v1477 = vsel %vm1461, %v1404, 0.0
        %v1478 = vadd.f32 %v1476, %v1477
        %v1479 = vsel %vm1461, %v1405, 0.0
        %v1480 = vadd.f32 %v1478, %v1479
        %v1481 = vsel %vm1461, %v1406, 0.0
        %v1482 = vadd.f32 %v1480, %v1481
        %v1483 = vsel %vm1461, %v1407, 0.0
        %v1484 = vadd.f32 %v1482, %v1483
        %v1485 = vsel %vm1461, %v1408, 0.0
        %v1486 = vadd.f32 %v1484, %v1485
        %v1487 = vsel %vm1461, %v1409, 0.0
        %v1488 = vadd.f32 %v1486, %v1487
        %v1489 = vsel %vm1461, %v1410, 0.0
        %v1490 = vadd.f32 %v1488, %v1489
        %v1491 = vsel %vm1461, %v1411, 0.0
        %v1492 = vadd.f32 %v1490, %v1491
        %v1493 = vsel %vm1461, %v1412, 0.0
        %v1494 = vadd.f32 %v1492, %v1493
        %v1495 = vsel %vm1461, %v1413, 0.0
        %v1496 = vadd.f32 %v1494, %v1495
        %v1497 = vsel %vm1461, %v1414, 0.0
        %v1498 = vadd.f32 %v1496, %v1497
        %v1499 = vsel %vm1461, %v1415, 0.0
        %v1500 = vadd.f32 %v1498, %v1499
        %v1501 = vsel %vm1461, %v1416, 0.0
        %v1502 = vadd.f32 %v1500, %v1501
        %v1503 = vsel %vm1461, %v1417, 0.0
        %v1504 = vadd.f32 %v1502, %v1503
        %v1505 = vsel %vm1461, %v1418, 0.0
        %v1506 = vadd.f32 %v1504, %v1505
        %v1507 = vsel %vm1461, %v1419, 0.0
        %v1508 = vadd.f32 %v1506, %v1507
        %v1509 = vsel %vm1461, %v1420, 0.0
        %v1510 = vadd.f32 %v1508, %v1509
        %v1511 = vsel %vm1461, %v1421, 0.0
        %v1512 = vadd.f32 %v1510, %v1511
        %v1513 = vsel %vm1461, %v1422, 0.0
        %v1514 = vadd.f32 %v1512, %v1513
        %v1515 = vsel %vm1461, %v1423, 0.0
        %v1516 = vadd.f32 %v1514, %v1515
        %v1517 = vsel %vm1461, %v1424, 0.0
        %v1518 = vadd.f32 %v1516, %v1517
        %v1519 = vsel %vm1461, %v1425, 0.0
        %v1520 = vadd.f32 %v1518, %v1519
        %v1521 = vsel %vm1461, %v1426, 0.0
        %v1522 = vadd.f32 %v1520, %v1521
        %v1523 = vsel %vm1461, %v1427, 0.0
        %v1524 = vadd.f32 %v1522, %v1523
        %v1525 = vsel %vm1461, %v1428, 0.0
        %v1526 = vadd.f32 %v1524, %v1525
        %v1527 = vsel %vm1461, %v1429, 0.0
        %v1528 = vadd.f32 %v1526, %v1527
        %v1529 = vsel %vm1461, %v1430, 0.0
        %v1530 = vadd.f32 %v1528, %v1529
        %v1531 = vsel %vm1461, %v1431, 0.0
        %v1532 = vadd.f32 %v1530, %v1531
        %v1533 = vsel %vm1461, %v1432, 0.0
        %v1534 = vadd.f32 %v1532, %v1533
        %v1535 = vsel %vm1461, %v1433, 0.0
        %v1536 = vadd.f32 %v1534, %v1535
        %v1537 = vsel %vm1461, %v1434, 0.0
        %v1538 = vadd.f32 %v1536, %v1537
        %v1539 = vsel %vm1461, %v1435, 0.0
        %v1540 = vadd.f32 %v1538, %v1539
        %v1541 = vsel %vm1461, %v1436, 0.0
        %v1542 = vadd.f32 %v1540, %v1541
        %v1543 = vsel %vm1461, %v1437, 0.0
        %v1544 = vadd.f32 %v1542, %v1543
        %v1545 = vsel %vm1461, %v1438, 0.0
        %v1546 = vadd.f32 %v1544, %v1545
        %v1547 = vsel %vm1461, %v1439, 0.0
        %v1548 = vadd.f32 %v1546, %v1547
        %v1549 = vsel %vm1461, %v1440, 0.0
        %v1550 = vadd.f32 %v1548, %v1549
        %v1551 = vsel %vm1461, %v1441, 0.0
        %v1552 = vadd.f32 %v1550, %v1551
        %v1553 = vsel %vm1461, %v1442, 0.0
        %v1554 = vadd.f32 %v1552, %v1553
        %v1555 = vsel %vm1461, %v1443, 0.0
        %v1556 = vadd.f32 %v1554, %v1555
        %v1557 = vsel %vm1461, %v1444, 0.0
        %v1558 = vadd.f32 %v1556, %v1557
        %v1559 = vsel %vm1461, %v1445, 0.0
        %v1560 = vadd.f32 %v1558, %v1559
        %v1561 = vsel %vm1461, %v1446, 0.0
        %v1562 = vadd.f32 %v1560, %v1561
        %v1563 = vsel %vm1461, %v1447, 0.0
        %v1564 = vadd.f32 %v1562, %v1563
        %v1565 = vsel %vm1461, %v1448, 0.0
        %v1566 = vadd.f32 %v1564, %v1565
        %v1567 = vsel %vm1461, %v1449, 0.0
        %v1568 = vadd.f32 %v1566, %v1567
        %v1569 = vsel %vm1461, %v1450, 0.0
        %v1570 = vadd.f32 %v1568, %v1569
        %v1571 = vsel %vm1461, %v1451, 0.0
        %v1572 = vadd.f32 %v1570, %v1571
        %v1573 = vsel %vm1461, %v1452, 0.0
        %v1574 = vadd.f32 %v1572, %v1573
        %v1575 = vsel %vm1461, %v1453, 0.0
        %v1576 = vadd.f32 %v1574, %v1575
        %v1577 = vsel %vm1461, %v1454, 0.0
        %v1578 = vadd.f32 %v1576, %v1577
        %v1579 = vsel %vm1461, %v1455, 0.0
        %v1580 = vadd.f32 %v1578, %v1579
        %v1581 = vsel %vm1461, %v1456, 0.0
        %v1582 = vadd.f32 %v1580, %v1581
        %v1583 = vsel %vm1461, %v1457, 0.0
        %v1584 = vadd.f32 %v1582, %v1583
        %v1585 = vsel %vm1461, %v1458, 0.0
        %v1586 = vadd.f32 %v1584, %v1585
        %v1587 = vsel %vm1461, %v1459, 0.0
        %v1588 = vadd.f32 %v1586, %v1587
        %v1589 = vrot.slane %v1588, 4
        %v1590 = vadd.f32 %v1588, %v1589
        %v1591 = vrot.slane %v1590, 2
        %v1592 = vadd.f32 %v1590, %v1591
        %v1593 = vrot.slane %v1592, 1
        %v1594 = vadd.f32 %v1592, %v1593
        %v1595 = vadd.f32 %v1460, %v1594
        %vm1596 = vcmask 57344
        %1597 = vst.msk [vmem:[#allocation2] sm:$0x1] %vm1596, %v1595
        %v1598 = vld [vmem:[#allocation3] sm:$0x1]
        %v1599 = vmul.f32 %v1396, %v1396
        %v1600 = vmul.f32 %v1397, %v1397
        %v1601 = vmul.f32 %v1398, %v1398
        %v1602 = vmul.f32 %v1399, %v1399
        %v1603 = vmul.f32 %v1400, %v1400
        %v1604 = vmul.f32 %v1401, %v1401
        %v1605 = vmul.f32 %v1402, %v1402
        %v1606 = vmul.f32 %v1403, %v1403
        %v1607 = vmul.f32 %v1404, %v1404
        %v1608 = vmul.f32 %v1405, %v1405
        %v1609 = vmul.f32 %v1406, %v1406
        %v1610 = vmul.f32 %v1407, %v1407
        %v1611 = vmul.f32 %v1408, %v1408
        %v1612 = vmul.f32 %v1409, %v1409
        %v1613 = vmul.f32 %v1410, %v1410
        %v1614 = vmul.f32 %v1411, %v1411
        %v1615 = vmul.f32 %v1412, %v1412
        %v1616 = vmul.f32 %v1413, %v1413
        %v1617 = vmul.f32 %v1414, %v1414
        %v1618 = vmul.f32 %v1415, %v1415
        %v1619 = vmul.f32 %v1416, %v1416
        %v1620 = vmul.f32 %v1417, %v1417
        %v1621 = vmul.f32 %v1418, %v1418
        %v1622 = vmul.f32 %v1419, %v1419
        %v1623 = vmul.f32 %v1420, %v1420
        %v1624 = vmul.f32 %v1421, %v1421
        %v1625 = vmul.f32 %v1422, %v1422
        %v1626 = vmul.f32 %v1423, %v1423
        %v1627 = vmul.f32 %v1424, %v1424
        %v1628 = vmul.f32 %v1425, %v1425
        %v1629 = vmul.f32 %v1426, %v1426
        %v1630 = vmul.f32 %v1427, %v1427
        %v1631 = vmul.f32 %v1428, %v1428
        %v1632 = vmul.f32 %v1429, %v1429
        %v1633 = vmul.f32 %v1430, %v1430
        %v1634 = vmul.f32 %v1431, %v1431
        %v1635 = vmul.f32 %v1432, %v1432
        %v1636 = vmul.f32 %v1433, %v1433
        %v1637 = vmul.f32 %v1434, %v1434
        %v1638 = vmul.f32 %v1435, %v1435
        %v1639 = vmul.f32 %v1436, %v1436
        %v1640 = vmul.f32 %v1437, %v1437
        %v1641 = vmul.f32 %v1438, %v1438
        %v1642 = vmul.f32 %v1439, %v1439
        %v1643 = vmul.f32 %v1440, %v1440
        %v1644 = vmul.f32 %v1441, %v1441
        %v1645 = vmul.f32 %v1442, %v1442
        %v1646 = vmul.f32 %v1443, %v1443
        %v1647 = vmul.f32 %v1444, %v1444
        %v1648 = vmul.f32 %v1445, %v1445
        %v1649 = vmul.f32 %v1446, %v1446
        %v1650 = vmul.f32 %v1447, %v1447
        %v1651 = vmul.f32 %v1448, %v1448
        %v1652 = vmul.f32 %v1449, %v1449
        %v1653 = vmul.f32 %v1450, %v1450
        %v1654 = vmul.f32 %v1451, %v1451
        %v1655 = vmul.f32 %v1452, %v1452
        %v1656 = vmul.f32 %v1453, %v1453
        %v1657 = vmul.f32 %v1454, %v1454
        %v1658 = vmul.f32 %v1455, %v1455
        %v1659 = vmul.f32 %v1456, %v1456
        %v1660 = vmul.f32 %v1457, %v1457
        %v1661 = vmul.f32 %v1458, %v1458
        %v1662 = vmul.f32 %v1459, %v1459
        %v1663 = vsel %vm1461, %v1599, 0.0
        %v1664 = vsel %vm1461, %v1600, 0.0
        %v1665 = vadd.f32 %v1663, %v1664
        %v1666 = vsel %vm1461, %v1601, 0.0
        %v1667 = vadd.f32 %v1665, %v1666
        %v1668 = vsel %vm1461, %v1602, 0.0
        %v1669 = vadd.f32 %v1667, %v1668
        %v1670 = vsel %vm1461, %v1603, 0.0
        %v1671 = vadd.f32 %v1669, %v1670
        %v1672 = vsel %vm1461, %v1604, 0.0
        %v1673 = vadd.f32 %v1671, %v1672
        %v1674 = vsel %vm1461, %v1605, 0.0
        %v1675 = vadd.f32 %v1673, %v1674
        %v1676 = vsel %vm1461, %v1606, 0.0
        %v1677 = vadd.f32 %v1675, %v1676
        %v1678 = vsel %vm1461, %v1607, 0.0
        %v1679 = vadd.f32 %v1677, %v1678
        %v1680 = vsel %vm1461, %v1608, 0.0
        %v1681 = vadd.f32 %v1679, %v1680
        %v1682 = vsel %vm1461, %v1609, 0.0
        %v1683 = vadd.f32 %v1681, %v1682
        %v1684 = vsel %vm1461, %v1610, 0.0
        %v1685 = vadd.f32 %v1683, %v1684
        %v1686 = vsel %vm1461, %v1611, 0.0
        %v1687 = vadd.f32 %v1685, %v1686
        %v1688 = vsel %vm1461, %v1612, 0.0
        %v1689 = vadd.f32 %v1687, %v1688
        %v1690 = vsel %vm1461, %v1613, 0.0
        %v1691 = vadd.f32 %v1689, %v1690
        %v1692 = vsel %vm1461, %v1614, 0.0
        %v1693 = vadd.f32 %v1691, %v1692
        %v1694 = vsel %vm1461, %v1615, 0.0
        %v1695 = vadd.f32 %v1693, %v1694
        %v1696 = vsel %vm1461, %v1616, 0.0
        %v1697 = vadd.f32 %v1695, %v1696
        %v1698 = vsel %vm1461, %v1617, 0.0
        %v1699 = vadd.f32 %v1697, %v1698
        %v1700 = vsel %vm1461, %v1618, 0.0
        %v1701 = vadd.f32 %v1699, %v1700
        %v1702 = vsel %vm1461, %v1619, 0.0
        %v1703 = vadd.f32 %v1701, %v1702
        %v1704 = vsel %vm1461, %v1620, 0.0
        %v1705 = vadd.f32 %v1703, %v1704
        %v1706 = vsel %vm1461, %v1621, 0.0
        %v1707 = vadd.f32 %v1705, %v1706
        %v1708 = vsel %vm1461, %v1622, 0.0
        %v1709 = vadd.f32 %v1707, %v1708
        %v1710 = vsel %vm1461, %v1623, 0.0
        %v1711 = vadd.f32 %v1709, %v1710
        %v1712 = vsel %vm1461, %v1624, 0.0
        %v1713 = vadd.f32 %v1711, %v1712
        %v1714 = vsel %vm1461, %v1625, 0.0
        %v1715 = vadd.f32 %v1713, %v1714
        %v1716 = vsel %vm1461, %v1626, 0.0
        %v1717 = vadd.f32 %v1715, %v1716
        %v1718 = vsel %vm1461, %v1627, 0.0
        %v1719 = vadd.f32 %v1717, %v1718
        %v1720 = vsel %vm1461, %v1628, 0.0
        %v1721 = vadd.f32 %v1719, %v1720
        %v1722 = vsel %vm1461, %v1629, 0.0
        %v1723 = vadd.f32 %v1721, %v1722
        %v1724 = vsel %vm1461, %v1630, 0.0
        %v1725 = vadd.f32 %v1723, %v1724
        %v1726 = vsel %vm1461, %v1631, 0.0
        %v1727 = vadd.f32 %v1725, %v1726
        %v1728 = vsel %vm1461, %v1632, 0.0
        %v1729 = vadd.f32 %v1727, %v1728
        %v1730 = vsel %vm1461, %v1633, 0.0
        %v1731 = vadd.f32 %v1729, %v1730
        %v1732 = vsel %vm1461, %v1634, 0.0
        %v1733 = vadd.f32 %v1731, %v1732
        %v1734 = vsel %vm1461, %v1635, 0.0
        %v1735 = vadd.f32 %v1733, %v1734
        %v1736 = vsel %vm1461, %v1636, 0.0
        %v1737 = vadd.f32 %v1735, %v1736
        %v1738 = vsel %vm1461, %v1637, 0.0
        %v1739 = vadd.f32 %v1737, %v1738
        %v1740 = vsel %vm1461, %v1638, 0.0
        %v1741 = vadd.f32 %v1739, %v1740
        %v1742 = vsel %vm1461, %v1639, 0.0
        %v1743 = vadd.f32 %v1741, %v1742
        %v1744 = vsel %vm1461, %v1640, 0.0
        %v1745 = vadd.f32 %v1743, %v1744
        %v1746 = vsel %vm1461, %v1641, 0.0
        %v1747 = vadd.f32 %v1745, %v1746
        %v1748 = vsel %vm1461, %v1642, 0.0
        %v1749 = vadd.f32 %v1747, %v1748
        %v1750 = vsel %vm1461, %v1643, 0.0
        %v1751 = vadd.f32 %v1749, %v1750
        %v1752 = vsel %vm1461, %v1644, 0.0
        %v1753 = vadd.f32 %v1751, %v1752
        %v1754 = vsel %vm1461, %v1645, 0.0
        %v1755 = vadd.f32 %v1753, %v1754
        %v1756 = vsel %vm1461, %v1646, 0.0
        %v1757 = vadd.f32 %v1755, %v1756
        %v1758 = vsel %vm1461, %v1647, 0.0
        %v1759 = vadd.f32 %v1757, %v1758
        %v1760 = vsel %vm1461, %v1648, 0.0
        %v1761 = vadd.f32 %v1759, %v1760
        %v1762 = vsel %vm1461, %v1649, 0.0
        %v1763 = vadd.f32 %v1761, %v1762
        %v1764 = vsel %vm1461, %v1650, 0.0
        %v1765 = vadd.f32 %v1763, %v1764
        %v1766 = vsel %vm1461, %v1651, 0.0
        %v1767 = vadd.f32 %v1765, %v1766
        %v1768 = vsel %vm1461, %v1652, 0.0
        %v1769 = vadd.f32 %v1767, %v1768
        %v1770 = vsel %vm1461, %v1653, 0.0
        %v1771 = vadd.f32 %v1769, %v1770
        %v1772 = vsel %vm1461, %v1654, 0.0
        %v1773 = vadd.f32 %v1771, %v1772
        %v1774 = vsel %vm1461, %v1655, 0.0
        %v1775 = vadd.f32 %v1773, %v1774
        %v1776 = vsel %vm1461, %v1656, 0.0
        %v1777 = vadd.f32 %v1775, %v1776
        %v1778 = vsel %vm1461, %v1657, 0.0
        %v1779 = vadd.f32 %v1777, %v1778
        %v1780 = vsel %vm1461, %v1658, 0.0
        %v1781 = vadd.f32 %v1779, %v1780
        %v1782 = vsel %vm1461, %v1659, 0.0
        %v1783 = vadd.f32 %v1781, %v1782
        %v1784 = vsel %vm1461, %v1660, 0.0
        %v1785 = vadd.f32 %v1783, %v1784
        %v1786 = vsel %vm1461, %v1661, 0.0
        %v1787 = vadd.f32 %v1785, %v1786
        %v1788 = vsel %vm1461, %v1662, 0.0
        %v1789 = vadd.f32 %v1787, %v1788
        %v1790 = vrot.slane %v1789, 4
        %v1791 = vadd.f32 %v1789, %v1790
        %v1792 = vrot.slane %v1791, 2
        %v1793 = vadd.f32 %v1791, %v1792
        %v1794 = vrot.slane %v1793, 1
        %v1795 = vadd.f32 %v1793, %v1794
        %v1796 = vadd.f32 %v1598, %v1795
        %1797 = vst.msk [vmem:[#allocation3] sm:$0x1] %vm1596, %v1796
      $region44: #{tpu_custom_call.1} parent=35 // pred_fallthru
        _
      // Predicated region
      $region45: #{tpu_custom_call.1} parent=35 // pred_check
        _
      $region46: #{tpu_custom_call.1} parent=35 // pred_check_branch
        %1799 = sbr.rel (%p855) target = $region48
      $region47: #{tpu_custom_call.1} parent=35 // pred_region
        %v1800 = vld [vmem:[#allocation2] sm:$0x1]
        %v1801 = vmul.f32 %v1800, 0.001953125
        %v1802 = vld [vmem:[#allocation3] sm:$0x1]
        %v1803 = vmul.f32 %v1802, 0.001953125
        %v1804 = vmul.f32 %v1801, %v1801
        %v1805 = vsub.f32 %v1803, %v1804
        %v1806 = vmax.f32 %v1805, 0.0
        %v1807 = vld [vmem:[#allocation4] sm:$0x1]
        %v1808 = vadd.f32 %v1801, %v1807
        %v1809 = vld [vmem:[%s2] sm:$0x1]
        %v1810 = vadd.f32 %v1806, 1e-05
        %v1811 = vrsqrt.pop %v1810
        %v1812 = vmul.f32 %v1809, %v1811
        %vm1813 = vcmask 57344
        %1814 = vst.msk [vmem:[#allocation5] sm:$0x1] %vm1813, %v1812
        %v1815 = vld [vmem:[%s3] sm:$0x1]
        %v1816 = vmul.f32 %v1808, %v1812
        %v1817 = vsub.f32 %v1815, %v1816
        %1818 = vst.msk [vmem:[#allocation6] sm:$0x1] %vm1813, %v1817
      $region48: #{tpu_custom_call.1} parent=35 // pred_fallthru
        _
      %p1819 = scmp.eq.s32.totalorder %s19, 1
      // Predicated region
      $region49: #{tpu_custom_call.1} parent=35 // pred_check
        %p1820 = pneg %p1819
      $region50: #{tpu_custom_call.1} parent=35 // pred_check_branch
        %1822 = sbr.rel (%p1820) target = $region52
      $region51: #{tpu_custom_call.1} parent=35 // pred_region
        %v1823 = vld [vmem:[#allocation5] sm:$0x1]
        %v1825 = vlaneseq
        %v1826 = vshrl.u32 %v1825, 7
        %v1827 = vsub.s32 0, %v1826
        %v1828 = vrot.slane %v1823, %v1827
        %v1830 = vmul.f32 %v599, %v1828
        %v1831 = vmul.f32 %v602, %v1828
        %v1832 = vmul.f32 %v607, %v1828
        %v1833 = vmul.f32 %v610, %v1828
        %v1834 = vmul.f32 %v615, %v1828
        %v1835 = vmul.f32 %v618, %v1828
        %v1836 = vmul.f32 %v623, %v1828
        %v1837 = vmul.f32 %v626, %v1828
        %v1838 = vmul.f32 %v631, %v1828
        %v1839 = vmul.f32 %v634, %v1828
        %v1840 = vmul.f32 %v639, %v1828
        %v1841 = vmul.f32 %v642, %v1828
        %v1842 = vmul.f32 %v647, %v1828
        %v1843 = vmul.f32 %v650, %v1828
        %v1844 = vmul.f32 %v655, %v1828
        %v1845 = vmul.f32 %v658, %v1828
        %v1846 = vmul.f32 %v663, %v1828
        %v1847 = vmul.f32 %v666, %v1828
        %v1848 = vmul.f32 %v671, %v1828
        %v1849 = vmul.f32 %v674, %v1828
        %v1850 = vmul.f32 %v679, %v1828
        %v1851 = vmul.f32 %v682, %v1828
        %v1852 = vmul.f32 %v687, %v1828
        %v1853 = vmul.f32 %v690, %v1828
        %v1854 = vmul.f32 %v695, %v1828
        %v1855 = vmul.f32 %v698, %v1828
        %v1856 = vmul.f32 %v703, %v1828
        %v1857 = vmul.f32 %v706, %v1828
        %v1858 = vmul.f32 %v711, %v1828
        %v1859 = vmul.f32 %v714, %v1828
        %v1860 = vmul.f32 %v719, %v1828
        %v1861 = vmul.f32 %v722, %v1828
        %v1862 = vmul.f32 %v727, %v1828
        %v1863 = vmul.f32 %v730, %v1828
        %v1864 = vmul.f32 %v735, %v1828
        %v1865 = vmul.f32 %v738, %v1828
        %v1866 = vmul.f32 %v743, %v1828
        %v1867 = vmul.f32 %v746, %v1828
        %v1868 = vmul.f32 %v751, %v1828
        %v1869 = vmul.f32 %v754, %v1828
        %v1870 = vmul.f32 %v759, %v1828
        %v1871 = vmul.f32 %v762, %v1828
        %v1872 = vmul.f32 %v767, %v1828
        %v1873 = vmul.f32 %v770, %v1828
        %v1874 = vmul.f32 %v775, %v1828
        %v1875 = vmul.f32 %v778, %v1828
        %v1876 = vmul.f32 %v783, %v1828
        %v1877 = vmul.f32 %v786, %v1828
        %v1878 = vmul.f32 %v791, %v1828
        %v1879 = vmul.f32 %v794, %v1828
        %v1880 = vmul.f32 %v799, %v1828
        %v1881 = vmul.f32 %v802, %v1828
        %v1882 = vmul.f32 %v807, %v1828
        %v1883 = vmul.f32 %v810, %v1828
        %v1884 = vmul.f32 %v815, %v1828
        %v1885 = vmul.f32 %v818, %v1828
        %v1886 = vmul.f32 %v823, %v1828
        %v1887 = vmul.f32 %v826, %v1828
        %v1888 = vmul.f32 %v831, %v1828
        %v1889 = vmul.f32 %v834, %v1828
        %v1890 = vmul.f32 %v839, %v1828
        %v1891 = vmul.f32 %v842, %v1828
        %v1892 = vmul.f32 %v847, %v1828
        %v1893 = vmul.f32 %v850, %v1828
        %v1894 = vld [vmem:[#allocation6] sm:$0x1]
        %v1896 = vlaneseq
        %v1897 = vshrl.u32 %v1896, 7
        %v1898 = vsub.s32 0, %v1897
        %v1899 = vrot.slane %v1894, %v1898
        %v1901 = vadd.f32 %v1830, %v1899
        %v1902 = vadd.f32 %v1831, %v1899
        %v1903 = vadd.f32 %v1832, %v1899
        %v1904 = vadd.f32 %v1833, %v1899
        %v1905 = vadd.f32 %v1834, %v1899
        %v1906 = vadd.f32 %v1835, %v1899
        %v1907 = vadd.f32 %v1836, %v1899
        %v1908 = vadd.f32 %v1837, %v1899
        %v1909 = vadd.f32 %v1838, %v1899
        %v1910 = vadd.f32 %v1839, %v1899
        %v1911 = vadd.f32 %v1840, %v1899
        %v1912 = vadd.f32 %v1841, %v1899
        %v1913 = vadd.f32 %v1842, %v1899
        %v1914 = vadd.f32 %v1843, %v1899
        %v1915 = vadd.f32 %v1844, %v1899
        %v1916 = vadd.f32 %v1845, %v1899
        %v1917 = vadd.f32 %v1846, %v1899
        %v1918 = vadd.f32 %v1847, %v1899
        %v1919 = vadd.f32 %v1848, %v1899
        %v1920 = vadd.f32 %v1849, %v1899
        %v1921 = vadd.f32 %v1850, %v1899
        %v1922 = vadd.f32 %v1851, %v1899
        %v1923 = vadd.f32 %v1852, %v1899
        %v1924 = vadd.f32 %v1853, %v1899
        %v1925 = vadd.f32 %v1854, %v1899
        %v1926 = vadd.f32 %v1855, %v1899
        %v1927 = vadd.f32 %v1856, %v1899
        %v1928 = vadd.f32 %v1857, %v1899
        %v1929 = vadd.f32 %v1858, %v1899
        %v1930 = vadd.f32 %v1859, %v1899
        %v1931 = vadd.f32 %v1860, %v1899
        %v1932 = vadd.f32 %v1861, %v1899
        %v1933 = vadd.f32 %v1862, %v1899
        %v1934 = vadd.f32 %v1863, %v1899
        %v1935 = vadd.f32 %v1864, %v1899
        %v1936 = vadd.f32 %v1865, %v1899
        %v1937 = vadd.f32 %v1866, %v1899
        %v1938 = vadd.f32 %v1867, %v1899
        %v1939 = vadd.f32 %v1868, %v1899
        %v1940 = vadd.f32 %v1869, %v1899
        %v1941 = vadd.f32 %v1870, %v1899
        %v1942 = vadd.f32 %v1871, %v1899
        %v1943 = vadd.f32 %v1872, %v1899
        %v1944 = vadd.f32 %v1873, %v1899
        %v1945 = vadd.f32 %v1874, %v1899
        %v1946 = vadd.f32 %v1875, %v1899
        %v1947 = vadd.f32 %v1876, %v1899
        %v1948 = vadd.f32 %v1877, %v1899
        %v1949 = vadd.f32 %v1878, %v1899
        %v1950 = vadd.f32 %v1879, %v1899
        %v1951 = vadd.f32 %v1880, %v1899
        %v1952 = vadd.f32 %v1881, %v1899
        %v1953 = vadd.f32 %v1882, %v1899
        %v1954 = vadd.f32 %v1883, %v1899
        %v1955 = vadd.f32 %v1884, %v1899
        %v1956 = vadd.f32 %v1885, %v1899
        %v1957 = vadd.f32 %v1886, %v1899
        %v1958 = vadd.f32 %v1887, %v1899
        %v1959 = vadd.f32 %v1888, %v1899
        %v1960 = vadd.f32 %v1889, %v1899
        %v1961 = vadd.f32 %v1890, %v1899
        %v1962 = vadd.f32 %v1891, %v1899
        %v1963 = vadd.f32 %v1892, %v1899
        %v1964 = vadd.f32 %v1893, %v1899
        %vm1965 = vcmask 64512
        %1966 = vst.msk [vmem:[%s215] sm:$0xff] %vm1965, %v1901
        %1967 = vst.msk [vmem:[%s215 + $0x8] sm:$0xff] %vm1965, %v1902
        %1968 = vst.msk [vmem:[%s215 + $0x10] sm:$0xff] %vm1965, %v1903
        %1969 = vst.msk [vmem:[%s215 + $0x18] sm:$0xff] %vm1965, %v1904
        %1970 = vst.msk [vmem:[%s215 + $0x20] sm:$0xff] %vm1965, %v1905
        %1971 = vst.msk [vmem:[%s215 + $0x28] sm:$0xff] %vm1965, %v1906
        %1972 = vst.msk [vmem:[%s215 + $0x30] sm:$0xff] %vm1965, %v1907
        %1973 = vst.msk [vmem:[%s215 + $0x38] sm:$0xff] %vm1965, %v1908
        %1974 = vst.msk [vmem:[%s215 + $0x40] sm:$0xff] %vm1965, %v1909
        %1975 = vst.msk [vmem:[%s215 + $0x48] sm:$0xff] %vm1965, %v1910
        %1976 = vst.msk [vmem:[%s215 + $0x50] sm:$0xff] %vm1965, %v1911
        %1977 = vst.msk [vmem:[%s215 + $0x58] sm:$0xff] %vm1965, %v1912
        %1978 = vst.msk [vmem:[%s215 + $0x60] sm:$0xff] %vm1965, %v1913
        %1979 = vst.msk [vmem:[%s215 + $0x68] sm:$0xff] %vm1965, %v1914
        %1980 = vst.msk [vmem:[%s215 + $0x70] sm:$0xff] %vm1965, %v1915
        %1981 = vst.msk [vmem:[%s215 + $0x78] sm:$0xff] %vm1965, %v1916
        %1982 = vst.msk [vmem:[%s215 + $0x80] sm:$0xff] %vm1965, %v1917
        %1983 = vst.msk [vmem:[%s215 + $0x88] sm:$0xff] %vm1965, %v1918
        %1984 = vst.msk [vmem:[%s215 + $0x90] sm:$0xff] %vm1965, %v1919
        %1985 = vst.msk [vmem:[%s215 + $0x98] sm:$0xff] %vm1965, %v1920
        %1986 = vst.msk [vmem:[%s215 + $0xa0] sm:$0xff] %vm1965, %v1921
        %1987 = vst.msk [vmem:[%s215 + $0xa8] sm:$0xff] %vm1965, %v1922
        %1988 = vst.msk [vmem:[%s215 + $0xb0] sm:$0xff] %vm1965, %v1923
        %1989 = vst.msk [vmem:[%s215 + $0xb8] sm:$0xff] %vm1965, %v1924
        %1990 = vst.msk [vmem:[%s215 + $0xc0] sm:$0xff] %vm1965, %v1925
        %1991 = vst.msk [vmem:[%s215 + $0xc8] sm:$0xff] %vm1965, %v1926
        %1992 = vst.msk [vmem:[%s215 + $0xd0] sm:$0xff] %vm1965, %v1927
        %1993 = vst.msk [vmem:[%s215 + $0xd8] sm:$0xff] %vm1965, %v1928
        %1994 = vst.msk [vmem:[%s215 + $0xe0] sm:$0xff] %vm1965, %v1929
        %1995 = vst.msk [vmem:[%s215 + $0xe8] sm:$0xff] %vm1965, %v1930
        %1996 = vst.msk [vmem:[%s215 + $0xf0] sm:$0xff] %vm1965, %v1931
        %1997 = vst.msk [vmem:[%s215 + $0xf8] sm:$0xff] %vm1965, %v1932
        %1998 = vst.msk [vmem:[%s215 + $0x100] sm:$0xff] %vm1965, %v1933
        %1999 = vst.msk [vmem:[%s215 + $0x108] sm:$0xff] %vm1965, %v1934
        %2000 = vst.msk [vmem:[%s215 + $0x110] sm:$0xff] %vm1965, %v1935
        %2001 = vst.msk [vmem:[%s215 + $0x118] sm:$0xff] %vm1965, %v1936
        %2002 = vst.msk [vmem:[%s215 + $0x120] sm:$0xff] %vm1965, %v1937
        %2003 = vst.msk [vmem:[%s215 + $0x128] sm:$0xff] %vm1965, %v1938
        %2004 = vst.msk [vmem:[%s215 + $0x130] sm:$0xff] %vm1965, %v1939
        %2005 = vst.msk [vmem:[%s215 + $0x138] sm:$0xff] %vm1965, %v1940
        %2006 = vst.msk [vmem:[%s215 + $0x140] sm:$0xff] %vm1965, %v1941
        %2007 = vst.msk [vmem:[%s215 + $0x148] sm:$0xff] %vm1965, %v1942
        %2008 = vst.msk [vmem:[%s215 + $0x150] sm:$0xff] %vm1965, %v1943
        %2009 = vst.msk [vmem:[%s215 + $0x158] sm:$0xff] %vm1965, %v1944
        %2010 = vst.msk [vmem:[%s215 + $0x160] sm:$0xff] %vm1965, %v1945
        %2011 = vst.msk [vmem:[%s215 + $0x168] sm:$0xff] %vm1965, %v1946
        %2012 = vst.msk [vmem:[%s215 + $0x170] sm:$0xff] %vm1965, %v1947
        %2013 = vst.msk [vmem:[%s215 + $0x178] sm:$0xff] %vm1965, %v1948
        %2014 = vst.msk [vmem:[%s215 + $0x180] sm:$0xff] %vm1965, %v1949
        %2015 = vst.msk [vmem:[%s215 + $0x188] sm:$0xff] %vm1965, %v1950
        %2016 = vst.msk [vmem:[%s215 + $0x190] sm:$0xff] %vm1965, %v1951
        %2017 = vst.msk [vmem:[%s215 + $0x198] sm:$0xff] %vm1965, %v1952
        %2018 = vst.msk [vmem:[%s215 + $0x1a0] sm:$0xff] %vm1965, %v1953
        %2019 = vst.msk [vmem:[%s215 + $0x1a8] sm:$0xff] %vm1965, %v1954
        %2020 = vst.msk [vmem:[%s215 + $0x1b0] sm:$0xff] %vm1965, %v1955
        %2021 = vst.msk [vmem:[%s215 + $0x1b8] sm:$0xff] %vm1965, %v1956
        %2022 = vst.msk [vmem:[%s215 + $0x1c0] sm:$0xff] %vm1965, %v1957
        %2023 = vst.msk [vmem:[%s215 + $0x1c8] sm:$0xff] %vm1965, %v1958
        %2024 = vst.msk [vmem:[%s215 + $0x1d0] sm:$0xff] %vm1965, %v1959
        %2025 = vst.msk [vmem:[%s215 + $0x1d8] sm:$0xff] %vm1965, %v1960
        %2026 = vst.msk [vmem:[%s215 + $0x1e0] sm:$0xff] %vm1965, %v1961
        %2027 = vst.msk [vmem:[%s215 + $0x1e8] sm:$0xff] %vm1965, %v1962
        %2028 = vst.msk [vmem:[%s215 + $0x1f0] sm:$0xff] %vm1965, %v1963
        %2029 = vst.msk [vmem:[%s215 + $0x1f8] sm:$0xff] %vm1965, %v1964
      $region52: #{tpu_custom_call.1} parent=35 // pred_fallthru
        _
      %s2030 = smul.u32 %s19, %s20
      %s2031 = smul.u32 64, %s2030
      %p2032 = scmp.lt.s32.totalorder %s2031, 63
      %s2033 = scalar_select %p2032, %s2031, 63
      %s2034 = smul.addr %s2033, 8
      %s2035 = scalar_lea.vmem %s4, %s2034
      // Predicated region
      $region53: #{tpu_custom_call.1} parent=35 // pred_check
        %p2036 = pneg %p136
      $region54: #{tpu_custom_call.1} parent=35 // pred_check_branch
        %2038 = sbr.rel (%p2036) target = $region56
      $region55: #{tpu_custom_call.1} parent=35 // pred_region
        %s2039 = smul.u32 %s19, %s20
        %s2040 = smul.u32 64, %s2039
      $region56: #{tpu_custom_call.1} parent=35 // pred_fallthru
        _
    $region36: #{tpu_custom_call.1} parent=5 // pred_fallthru
      _
    %p2041 = scmp.le.s32.totalorder 2, %s10
    // Predicated region
    $region57: #{tpu_custom_call.1} parent=5 // pred_check
      %p2042 = pneg %p2041
    $region58: #{tpu_custom_call.1} parent=5 // pred_check_branch
      %2044 = sbr.rel (%p2042) target = $region60
    $region59: #{tpu_custom_call.1} parent=5 // pred_region
      %s2045 = ssub.s32 %s10, 2
      // Predicated region
      $region61: #{tpu_custom_call.1} parent=59 // pred_check
        %p2046 = pneg %p142
      $region62: #{tpu_custom_call.1} parent=59 // pred_check_branch
        %2048 = sbr.rel (%p2046) target = $region64
      $region63: #{tpu_custom_call.1} parent=59 // pred_region
        %s2049 = smul.u32 %s21, %s22
        %s2050 = smul.u32 64, %s2049
        %p2051 = scmp.lt.s32.totalorder %s2050, 63
        %s2052 = scalar_select %p2051, %s2050, 63
        %s2053 = smul.addr %s2052, 8
        %s2054 = scalar_lea.vmem %s4, %s2053
      $region64: #{tpu_custom_call.1} parent=59 // pred_fallthru
        _
    $region60: #{tpu_custom_call.1} parent=5 // pred_fallthru
      _
  $region6: #{tpu_custom_call.1} parent=0 // loop_footer
    %s14 = sadd.s32 1, %s10
  $region7: #{tpu_custom_call.1} parent=0 // loop_footer_branch
    %9 = sbr.rel target = $region3
  $region8: #{tpu_custom_call.1} parent=0 // loop_exit
    _

</llo_original>
